<compile_context>
chip_gen: v7x
topology: tpu7x:2x2x1
jax: 0.10.0
libtpu: 0.0.40
codegen_flags: <defaults>
</compile_context>

<pallas_src>
import jax
import jax.numpy as jnp
from jax import lax
from jax.experimental import pallas as pl
from jax.experimental.pallas import tpu as pltpu


def _softplus(z):
    # matches torch.nn.functional.softplus (beta=1, threshold=20)
    return jnp.where(z > 20.0, z, jnp.log1p(jnp.exp(jnp.minimum(z, 20.0))))


def _silu(z):
    return z * jax.nn.sigmoid(z)


def _largest_divisor(n, candidates):
    for c in candidates:
        if n % c == 0:
            return c
    return n


def mamba_kernel(x_ref,
                 w_in_ref, b_in_ref,
                 w_conv_ref, b_conv_ref,
                 w_x_ref, b_x_ref,
                 w_dt_ref, b_dt_ref,
                 w_out_ref, b_out_ref,
                 a_ref, d_ref,
                 out_ref,
                 state_s, halo_s, delta_s, u_s, b_s, c_s, y_s):
    seq_tile = pl.program_id(1)
    Lt = x_ref.shape[0]
    N, H = a_ref.shape                       # A stored transposed: (N, H), H on lanes
    R = w_dt_ref.shape[0]
    K = w_conv_ref.shape[0]

    # Reset carried state at the start of every batch element.
    @pl.when(seq_tile == 0)
    def _():
        state_s[...] = jnp.zeros_like(state_s)
        halo_s[...] = jnp.zeros_like(halo_s)

    x_bf = x_ref[...]                                               # bf16 (Lt, M)

    # ---- linear_in: ONE fused matmul, then slice xh / residual (f32) ----
    xr = jnp.dot(x_bf, w_in_ref[...], preferred_element_type=jnp.float32) + b_in_ref[...]
    xh = xr[:, :H]                                                  # (Lt, H)
    res = xr[:, H:]                                                 # (Lt, H)

    # ---- causal depthwise conv over seq; halo carried from previous tile ----
    halo = halo_s[...]                                              # (K-1, H)
    x_ext = jnp.concatenate([halo, xh], axis=0)                     # (Lt+K-1, H)
    halo_s[...] = xh[Lt - (K - 1):, :]                              # next tile's context
    w_conv = w_conv_ref[...]                                        # (K, H)
    conv = x_ext[0:Lt, :] * w_conv[0:1, :]
    for k in range(1, K):                                           # K small & static
        conv = conv + x_ext[k:k + Lt, :] * w_conv[k:k + 1, :]
    conv = conv + b_conv_ref[...]
    u = _silu(conv)                                                 # (Lt, H), f32
    u_bf = u.astype(jnp.bfloat16)

    # ---- linear_x: ONE fused matmul -> delta_lowrank / B / C ----
    x_dbl = jnp.dot(u_bf, w_x_ref[...], preferred_element_type=jnp.float32) + b_x_ref[...]
    dlt = x_dbl[:, :R]                                              # (Lt, R)
    Bm = x_dbl[:, R:R + N]                                          # (Lt, N)
    Cm = x_dbl[:, R + N:R + 2 * N]                                  # (Lt, N)

    # ---- linear_dt + softplus ----
    delta = _softplus(
        jnp.dot(dlt.astype(jnp.bfloat16), w_dt_ref[...],
                preferred_element_type=jnp.float32) + b_dt_ref[...])            # (Lt, H)

    # Stage small scan operands in scratch so they can be pl.ds-sliced inside
    # the block loop.  NOTE: no (Lt, N, H) tensors are materialized any more.
    delta_s[...] = delta
    u_s[...] = u
    b_s[...] = Bm
    c_s[...] = Cm

    # ---- selective scan: fused discretization, T_BLK steps/block, H chunks ----
    A_full = a_ref[...]                                             # (N, H), negative
    T_BLK = _largest_divisor(Lt, (8, 4, 2))                         # unrolled steps/block
    num_blk = Lt // T_BLK
    Hc = _largest_divisor(H, (512, 256, 128))                       # lanes per H chunk

    # Identity mask used to move a (1, N) lane-row into an (N, 1) sublane
    # column with plain elementwise ops + a lane reduce (no hardware transpose).
    eye_n = (lax.broadcasted_iota(jnp.int32, (N, N), 0) ==
             lax.broadcasted_iota(jnp.int32, (N, N), 1)).astype(jnp.float32)

    for h0 in range(0, H, Hc):                                      # static H-chunk loop
        A_c = A_full[:, h0:h0 + Hc]                                 # (N, Hc)

        def blk_body(blk, state, h0=h0, A_c=A_c):
            base = pl.multiple_of(blk * T_BLK, T_BLK)
            d_blk = delta_s[pl.ds(base, T_BLK), h0:h0 + Hc]         # (T_BLK, Hc)
            u_blk = u_s[pl.ds(base, T_BLK), h0:h0 + Hc]             # (T_BLK, Hc)
            du_blk = d_blk * u_blk                                  # delta * u
            b_blk = b_s[pl.ds(base, T_BLK), :]                      # (T_BLK, N)
            c_blk = c_s[pl.ds(base, T_BLK), :]                      # (T_BLK, N)
            rows = []
            for t in range(T_BLK):                                  # static unroll
                # row -> column relayout of B[t,:] / C[t,:] via masked reduce
                b_col = jnp.sum(jnp.broadcast_to(b_blk[t:t + 1, :], (N, N)) * eye_n,
                                axis=1, keepdims=True)              # (N, 1)
                c_col = jnp.sum(jnp.broadcast_to(c_blk[t:t + 1, :], (N, N)) * eye_n,
                                axis=1, keepdims=True)              # (N, 1)
                dA_t = jnp.exp(d_blk[t:t + 1, :] * A_c)             # (N, Hc)
                state = dA_t * state + b_col * du_blk[t:t + 1, :]   # (N, Hc)
                # single tree-reduce over the state dim (sublanes)
                rows.append(jnp.sum(state * c_col, axis=0, keepdims=True))  # (1, Hc)
            y_s[pl.ds(base, T_BLK), h0:h0 + Hc] = jnp.concatenate(rows, axis=0)
            return state

        state = lax.fori_loop(0, num_blk, blk_body, state_s[:, h0:h0 + Hc])
        state_s[:, h0:h0 + Hc] = state                              # carry across tiles

    # ---- skip term, gating, output projection ----
    y = y_s[...] + u_s[...] * d_ref[...]                            # (Lt, H)
    y = y * _silu(res)
    out = jnp.dot(y.astype(jnp.bfloat16), w_out_ref[...],
                  preferred_element_type=jnp.float32) + b_out_ref[...]
    out_ref[...] = out.astype(out_ref.dtype)


def _device_kind():
    try:
        return jax.devices()[0].device_kind.lower()
    except Exception:
        return ""


def _vmem_limit_bytes():
    """Generation-aware VMEM budget (leave headroom for Mosaic scratch)."""
    cap = None
    try:
        info = pltpu.get_tpu_info()
        for name in ("vmem_capacity_bytes", "vmem_size_bytes", "vmem_bytes"):
            cap = getattr(info, name, None)
            if cap:
                break
    except Exception:
        cap = None
    if not cap:
        kind = _device_kind()
        cap = (64 if ("v7" in kind or "7x" in kind) else 128) * 1024 * 1024
    return int(cap) * 3 // 4


def _default_l_tile(L):
    kind = _device_kind()
    target = 256 if "v6" in kind else 128    # v6e: fill the 256x256 MXU rows
    if L <= target:
        return L
    t = target
    while t >= 8 and L % t != 0:
        t -= 8
    return t if (t >= 8 and L % t == 0) else L


def mamba_layer_pallas(x, params, *, l_tile=None):
    B, L, M = x.shape
    H, N = params["A"].shape
    K = params["w_conv"].shape[0]
    R = params["w_dt"].shape[0]

    if l_tile is None:
        l_tile = _default_l_tile(L)
    assert L % l_tile == 0, "seq_len must be divisible by the sequence tile"
    if l_tile != L:
        assert l_tile % 8 == 0, "sequence tile must be a multiple of 8"
    assert l_tile >= K - 1, "sequence tile must cover the conv halo"

    bf = jnp.bfloat16
    x = x.astype(bf)   # halves input DMA; kernel used a bf16 MXU LHS anyway
    plist = [
        params["w_in"].astype(bf), params["b_in"],      # linear_in (fused)
        params["w_conv"], params["b_conv"],             # depthwise conv (f32)
        params["w_x"].astype(bf), params["b_x"],        # linear_x (fused)
        params["w_dt"].astype(bf), params["b_dt"],
        params["w_out"].astype(bf), params["b_out"],
        params["A"].T,                                  # (N, H): H on lanes
        params["D"],
    ]

    in_specs = [pl.BlockSpec((None, l_tile, M), lambda b, s: (b, s, 0))]
    # Grid-invariant weights (constant index map -> DMA'd once by the pipeline).
    # pl.Buffered(1) would also drop their second VMEM buffer; not applied here.
    in_specs += [pl.BlockSpec(p.shape, lambda b, s: (0, 0)) for p in plist]

    grid_spec = pltpu.PrefetchScalarGridSpec(
        num_scalar_prefetch=0,
        grid=(B, L // l_tile),
        in_specs=in_specs,
        out_specs=pl.BlockSpec((None, l_tile, M), lambda b, s: (b, s, 0)),
        scratch_shapes=[
            pltpu.VMEM((N, H), jnp.float32),           # SSM state (carried across tiles)
            pltpu.VMEM((K - 1, H), jnp.float32),       # conv halo (carried across tiles)
            pltpu.VMEM((l_tile, H), jnp.float32),      # delta
            pltpu.VMEM((l_tile, H), jnp.float32),      # u = silu(conv)
            pltpu.VMEM((l_tile, N), jnp.float32),      # B
            pltpu.VMEM((l_tile, N), jnp.float32),      # C
            pltpu.VMEM((l_tile, H), jnp.float32),      # scan outputs
        ],
    )
    return pl.pallas_call(
        mamba_kernel,
        grid_spec=grid_spec,
        out_shape=jax.ShapeDtypeStruct((B, L, M), jnp.float32),
        compiler_params=pltpu.CompilerParams(
            dimension_semantics=("parallel", "arbitrary"),
            vmem_limit_bytes=_vmem_limit_bytes(),
        ),
    )(x, *plist)


def make_params(key, model_size, hidden_size, rank, state_size, kernel_size):
    M, H, R, N, K = model_size, hidden_size, rank, state_size, kernel_size
    ks = jax.random.split(key, 6)

    def lin(k, fan_in, fan_out):
        kw, kb = jax.random.split(k)
        w = jax.random.normal(kw, (fan_in, fan_out), jnp.float32) * 0.05
        b = jax.random.normal(kb, (1, fan_out), jnp.float32) * 0.02
        return w, b

    w_in, b_in = lin(ks[0], M, 2 * H)
    w_x, b_x = lin(ks[1], H, R + 2 * N)
    w_dt, b_dt = lin(ks[2], R, H)
    w_out, b_out = lin(ks[3], H, M)
    w_conv = jax.random.normal(ks[4], (K, H), jnp.float32) * 0.1    # depthwise taps
    b_conv = jax.random.normal(ks[5], (1, H), jnp.float32) * 0.02
    # A_log = log(arange(1..N) + 1e-15) repeated over H; A = -exp(A_log)
    A_log = jnp.log(jnp.arange(1, N + 1, dtype=jnp.float32) + 1e-15)
    A = -jnp.exp(jnp.broadcast_to(A_log[None, :], (H, N)))
    D = jnp.ones((1, H), jnp.float32)
    return dict(w_in=w_in, b_in=b_in, w_conv=w_conv, b_conv=b_conv,
                w_x=w_x, b_x=b_x, w_dt=w_dt, b_dt=b_dt,
                w_out=w_out, b_out=b_out, A=A, D=D)


def mamba_layer_ref(x, p):
    """Pure-JAX reference (mirrors the PyTorch forward)."""
    B, L, M = x.shape
    H, N = p["A"].shape
    K = p["w_conv"].shape[0]
    R = p["w_dt"].shape[0]
    hi = lax.Precision.HIGHEST

    xr = jnp.dot(x, p["w_in"], precision=hi) + p["b_in"]            # (B, L, 2H)
    xh, res = xr[..., :H], xr[..., H:]
    xh_pad = jnp.pad(xh, ((0, 0), (K - 1, 0), (0, 0)))
    conv = jnp.zeros((B, L, H), jnp.float32)
    for k in range(K):
        conv = conv + xh_pad[:, k:k + L, :] * p["w_conv"][k][None, None, :]
    conv = conv + p["b_conv"]
    u = _silu(conv)

    x_dbl = jnp.dot(u, p["w_x"], precision=hi) + p["b_x"]
    dlt, Bm, Cm = x_dbl[..., :R], x_dbl[..., R:R + N], x_dbl[..., R + N:]
    delta = _softplus(jnp.dot(dlt, p["w_dt"], precision=hi) + p["b_dt"])  # (B, L, H)

    A = p["A"]
    dA = jnp.exp(delta[..., None] * A[None, None, :, :])            # (B, L, H, N)
    dBu = delta[..., None] * Bm[:, :, None, :] * u[..., None]       # (B, L, H, N)

    def step(state, inp):
        dA_t, dBu_t, C_t = inp
        state = dA_t * state + dBu_t
        y_t = jnp.sum(state * C_t[:, None, :], axis=-1)
        return state, y_t

    _, ys = lax.scan(step, jnp.zeros((B, H, N), jnp.float32),
                     (dA.transpose(1, 0, 2, 3), dBu.transpose(1, 0, 2, 3),
                      Cm.transpose(1, 0, 2)))
    y = ys.transpose(1, 0, 2) + u * p["D"]
    y = y * _silu(res)
    return jnp.dot(y, p["w_out"], precision=hi) + p["b_out"]


if __name__ == "__main__":
    model_size, hidden_size, rank, state_size, kernel_size = 32, 32, 8, 8, 4

    key = jax.random.PRNGKey(0)
    kx, kx2, kp = jax.random.split(key, 3)
    params = make_params(kp, model_size, hidden_size, rank, state_size, kernel_size)

    # Test 1: whole sequence in a single tile per batch element.
    batch, seq = 2, 8
    x = jax.random.normal(kx, (batch, seq, model_size), jnp.float32)
    out = jax.block_until_ready(mamba_layer_pallas(x, params))
    ref = mamba_layer_ref(x, params)
    assert out.shape == (batch, seq, model_size)
    diff = float(jnp.max(jnp.abs(out - ref)))
    assert jnp.allclose(out, ref, rtol=1e-2, atol=1e-2), f"max abs diff {diff}"

    # Test 2: tiled sequence (2 tiles) exercising SSM-state / conv-halo carry.
    x2 = jax.random.normal(kx2, (batch, 16, model_size), jnp.float32)
    out2 = jax.block_until_ready(mamba_layer_pallas(x2, params, l_tile=8))
    ref2 = mamba_layer_ref(x2, params)
    diff2 = float(jnp.max(jnp.abs(out2 - ref2)))
    assert jnp.allclose(out2, ref2, rtol=1e-2, atol=1e-2), f"max abs diff {diff2}"

    print("KERNEL_OK")
</pallas_src>

<mosaic_0001>
module attributes {stable_mosaic.version = 11 : i64} {
  func.func @mamba_kernel(%arg0: i32, %arg1: i32, %arg2: memref<1x8x32xbf16, #tpu.memory_space<vmem>>, %arg3: memref<32x64xbf16, #tpu.memory_space<vmem>>, %arg4: memref<1x64xf32, #tpu.memory_space<vmem>>, %arg5: memref<4x32xf32, #tpu.memory_space<vmem>>, %arg6: memref<1x32xf32, #tpu.memory_space<vmem>>, %arg7: memref<32x24xbf16, #tpu.memory_space<vmem>>, %arg8: memref<1x24xf32, #tpu.memory_space<vmem>>, %arg9: memref<8x32xbf16, #tpu.memory_space<vmem>>, %arg10: memref<1x32xf32, #tpu.memory_space<vmem>>, %arg11: memref<32x32xbf16, #tpu.memory_space<vmem>>, %arg12: memref<1x32xf32, #tpu.memory_space<vmem>>, %arg13: memref<8x32xf32, #tpu.memory_space<vmem>>, %arg14: memref<1x32xf32, #tpu.memory_space<vmem>>, %arg15: memref<1x8x32xf32, #tpu.memory_space<vmem>>, %arg16: memref<8x32xf32, #tpu.memory_space<vmem>>, %arg17: memref<3x32xf32, #tpu.memory_space<vmem>>, %arg18: memref<8x32xf32, #tpu.memory_space<vmem>>, %arg19: memref<8x32xf32, #tpu.memory_space<vmem>>, %arg20: memref<8x8xf32, #tpu.memory_space<vmem>>, %arg21: memref<8x8xf32, #tpu.memory_space<vmem>>, %arg22: memref<8x32xf32, #tpu.memory_space<vmem>>) attributes {dimension_semantics = [#tpu.dimension_semantics<parallel>, #tpu.dimension_semantics<arbitrary>], iteration_bounds = array<i64: 2, 1>, scalar_prefetch = 0 : i64, scratch_operands = 7 : i64, tpu.core_type = #tpu.core_type<tc>, window_params = [{transform_indices = @transform_0, window_bounds = array<i64: 1, 8, 32>}, {pipeline_mode = #tpu.pipeline_mode<synchronous>, transform_indices = @transform_1, window_bounds = array<i64: 32, 64>}, {pipeline_mode = #tpu.pipeline_mode<synchronous>, transform_indices = @transform_2, window_bounds = array<i64: 1, 64>}, {pipeline_mode = #tpu.pipeline_mode<synchronous>, transform_indices = @transform_3, window_bounds = array<i64: 4, 32>}, {pipeline_mode = #tpu.pipeline_mode<synchronous>, transform_indices = @transform_4, window_bounds = array<i64: 1, 32>}, {pipeline_mode = #tpu.pipeline_mode<synchronous>, transform_indices = @transform_5, window_bounds = array<i64: 32, 24>}, {pipeline_mode = #tpu.pipeline_mode<synchronous>, transform_indices = @transform_6, window_bounds = array<i64: 1, 24>}, {pipeline_mode = #tpu.pipeline_mode<synchronous>, transform_indices = @transform_7, window_bounds = array<i64: 8, 32>}, {pipeline_mode = #tpu.pipeline_mode<synchronous>, transform_indices = @transform_8, window_bounds = array<i64: 1, 32>}, {pipeline_mode = #tpu.pipeline_mode<synchronous>, transform_indices = @transform_9, window_bounds = array<i64: 32, 32>}, {pipeline_mode = #tpu.pipeline_mode<synchronous>, transform_indices = @transform_10, window_bounds = array<i64: 1, 32>}, {pipeline_mode = #tpu.pipeline_mode<synchronous>, transform_indices = @transform_11, window_bounds = array<i64: 8, 32>}, {pipeline_mode = #tpu.pipeline_mode<synchronous>, transform_indices = @transform_12, window_bounds = array<i64: 1, 32>}, {transform_indices = @transform_13, window_bounds = array<i64: 1, 8, 32>}]} {
    %c0_i32 = arith.constant 0 : i32
    %0 = arith.cmpi eq, %arg1, %c0_i32 : i32
    %1 = arith.extui %0 : i1 to i32
    %c0_i32_0 = arith.constant 0 : i32
    %2 = arith.cmpi ne, %1, %c0_i32_0 : i32
    scf.if %2 {
      %cst_87 = arith.constant 0.000000e+00 : f32
      %323 = vector.broadcast %cst_87 : f32 to vector<8x32xf32>
      %c0_88 = arith.constant 0 : index
      %c0_89 = arith.constant 0 : index
      %324 = vector.load %arg16[%c0_88, %c0_89] : memref<8x32xf32, #tpu.memory_space<vmem>>, vector<8x32xf32>
      tpu.vector_store %arg16[%c0_88, %c0_89], %323 {strides = array<i32>} : memref<8x32xf32, #tpu.memory_space<vmem>>, vector<8x32xf32>,
      %cst_90 = arith.constant 0.000000e+00 : f32
      %325 = vector.broadcast %cst_90 : f32 to vector<3x32xf32>
      %c0_91 = arith.constant 0 : index
      %c0_92 = arith.constant 0 : index
      %326 = vector.load %arg17[%c0_91, %c0_92] : memref<3x32xf32, #tpu.memory_space<vmem>>, vector<3x32xf32>
      tpu.vector_store %arg17[%c0_91, %c0_92], %325 {strides = array<i32>} : memref<3x32xf32, #tpu.memory_space<vmem>>, vector<3x32xf32>,
    } else {
    }
    %c0 = arith.constant 0 : index
    %c0_1 = arith.constant 0 : index
    %c0_2 = arith.constant 0 : index
    %3 = vector.load %arg2[%c0, %c0_1, %c0_2] : memref<1x8x32xbf16, #tpu.memory_space<vmem>>, vector<1x8x32xbf16>
    %4 = vector.shape_cast %3 : vector<1x8x32xbf16> to vector<8x32xbf16>
    %c0_3 = arith.constant 0 : index
    %c0_4 = arith.constant 0 : index
    %5 = vector.load %arg3[%c0_3, %c0_4] : memref<32x64xbf16, #tpu.memory_space<vmem>>, vector<32x64xbf16>
    %cst = arith.constant dense<0.000000e+00> : vector<8x64xf32>
    %6 = tpu.matmul %4, %5, %cst {dimension_numbers = #tpu.dot_dimension_numbers<[1], [0], [0], [1], [0, 0, 1, 1], [], []>} : vector<8x32xbf16>, vector<32x64xbf16>, vector<8x64xf32> -> vector<8x64xf32>
    %c0_5 = arith.constant 0 : index
    %c0_6 = arith.constant 0 : index
    %7 = vector.load %arg4[%c0_5, %c0_6] : memref<1x64xf32, #tpu.memory_space<vmem>>, vector<1x64xf32>
    %8 = vector.broadcast %7 : vector<1x64xf32> to vector<8x64xf32>
    %9 = arith.addf %6, %8 : vector<8x64xf32>
    %10 = vector.extract_strided_slice %9 {offsets = [0, 0], sizes = [8, 32], strides = [1, 1]} : vector<8x64xf32> to vector<8x32xf32>
    %11 = vector.extract_strided_slice %9 {offsets = [0, 32], sizes = [8, 32], strides = [1, 1]} : vector<8x64xf32> to vector<8x32xf32>
    %c0_7 = arith.constant 0 : index
    %c0_8 = arith.constant 0 : index
    %12 = vector.load %arg17[%c0_7, %c0_8] : memref<3x32xf32, #tpu.memory_space<vmem>>, vector<3x32xf32>
    %13 = tpu.concatenate %12, %10 in 0 : vector<3x32xf32>, vector<8x32xf32> -> vector<11x32xf32>
    %14 = vector.extract_strided_slice %10 {offsets = [5, 0], sizes = [3, 32], strides = [1, 1]} : vector<8x32xf32> to vector<3x32xf32>
    %c0_9 = arith.constant 0 : index
    %c0_10 = arith.constant 0 : index
    %15 = vector.load %arg17[%c0_9, %c0_10] : memref<3x32xf32, #tpu.memory_space<vmem>>, vector<3x32xf32>
    tpu.vector_store %arg17[%c0_9, %c0_10], %14 {strides = array<i32>} : memref<3x32xf32, #tpu.memory_space<vmem>>, vector<3x32xf32>,
    %c0_11 = arith.constant 0 : index
    %c0_12 = arith.constant 0 : index
    %16 = vector.load %arg5[%c0_11, %c0_12] : memref<4x32xf32, #tpu.memory_space<vmem>>, vector<4x32xf32>
    %17 = vector.extract_strided_slice %13 {offsets = [0, 0], sizes = [8, 32], strides = [1, 1]} : vector<11x32xf32> to vector<8x32xf32>
    %18 = vector.extract_strided_slice %16 {offsets = [0, 0], sizes = [1, 32], strides = [1, 1]} : vector<4x32xf32> to vector<1x32xf32>
    %19 = vector.broadcast %18 : vector<1x32xf32> to vector<8x32xf32>
    %20 = arith.mulf %17, %19 : vector<8x32xf32>
    %21 = vector.extract_strided_slice %13 {offsets = [1, 0], sizes = [8, 32], strides = [1, 1]} : vector<11x32xf32> to vector<8x32xf32>
    %22 = vector.extract_strided_slice %16 {offsets = [1, 0], sizes = [1, 32], strides = [1, 1]} : vector<4x32xf32> to vector<1x32xf32>
    %23 = vector.broadcast %22 : vector<1x32xf32> to vector<8x32xf32>
    %24 = arith.mulf %21, %23 : vector<8x32xf32>
    %25 = arith.addf %20, %24 : vector<8x32xf32>
    %26 = vector.extract_strided_slice %13 {offsets = [2, 0], sizes = [8, 32], strides = [1, 1]} : vector<11x32xf32> to vector<8x32xf32>
    %27 = vector.extract_strided_slice %16 {offsets = [2, 0], sizes = [1, 32], strides = [1, 1]} : vector<4x32xf32> to vector<1x32xf32>
    %28 = vector.broadcast %27 : vector<1x32xf32> to vector<8x32xf32>
    %29 = arith.mulf %26, %28 : vector<8x32xf32>
    %30 = arith.addf %25, %29 : vector<8x32xf32>
    %31 = vector.extract_strided_slice %13 {offsets = [3, 0], sizes = [8, 32], strides = [1, 1]} : vector<11x32xf32> to vector<8x32xf32>
    %32 = vector.extract_strided_slice %16 {offsets = [3, 0], sizes = [1, 32], strides = [1, 1]} : vector<4x32xf32> to vector<1x32xf32>
    %33 = vector.broadcast %32 : vector<1x32xf32> to vector<8x32xf32>
    %34 = arith.mulf %31, %33 : vector<8x32xf32>
    %35 = arith.addf %30, %34 : vector<8x32xf32>
    %c0_13 = arith.constant 0 : index
    %c0_14 = arith.constant 0 : index
    %36 = vector.load %arg6[%c0_13, %c0_14] : memref<1x32xf32, #tpu.memory_space<vmem>>, vector<1x32xf32>
    %37 = vector.broadcast %36 : vector<1x32xf32> to vector<8x32xf32>
    %38 = arith.addf %35, %37 : vector<8x32xf32>
    %39 = arith.negf %38 : vector<8x32xf32>
    %40 = math.exp %39 : vector<8x32xf32>
    %cst_15 = arith.constant 1.000000e+00 : f32
    %41 = vector.broadcast %cst_15 : f32 to vector<8x32xf32>
    %42 = arith.addf %41, %40 : vector<8x32xf32>
    %43 = arith.divf %41, %42 : vector<8x32xf32>
    %44 = arith.mulf %38, %43 : vector<8x32xf32>
    %45 = arith.truncf %44 : vector<8x32xf32> to vector<8x32xbf16>
    %c0_16 = arith.constant 0 : index
    %c0_17 = arith.constant 0 : index
    %46 = vector.load %arg7[%c0_16, %c0_17] : memref<32x24xbf16, #tpu.memory_space<vmem>>, vector<32x24xbf16>
    %cst_18 = arith.constant dense<0.000000e+00> : vector<8x24xf32>
    %47 = tpu.matmul %45, %46, %cst_18 {dimension_numbers = #tpu.dot_dimension_numbers<[1], [0], [0], [1], [0, 0, 1, 1], [], []>} : vector<8x32xbf16>, vector<32x24xbf16>, vector<8x24xf32> -> vector<8x24xf32>
    %c0_19 = arith.constant 0 : index
    %c0_20 = arith.constant 0 : index
    %48 = vector.load %arg8[%c0_19, %c0_20] : memref<1x24xf32, #tpu.memory_space<vmem>>, vector<1x24xf32>
    %49 = vector.broadcast %48 : vector<1x24xf32> to vector<8x24xf32>
    %50 = arith.addf %47, %49 : vector<8x24xf32>
    %51 = vector.extract_strided_slice %50 {offsets = [0, 0], sizes = [8, 8], strides = [1, 1]} : vector<8x24xf32> to vector<8x8xf32>
    %52 = vector.extract_strided_slice %50 {offsets = [0, 8], sizes = [8, 8], strides = [1, 1]} : vector<8x24xf32> to vector<8x8xf32>
    %53 = vector.extract_strided_slice %50 {offsets = [0, 16], sizes = [8, 8], strides = [1, 1]} : vector<8x24xf32> to vector<8x8xf32>
    %54 = arith.truncf %51 : vector<8x8xf32> to vector<8x8xbf16>
    %c0_21 = arith.constant 0 : index
    %c0_22 = arith.constant 0 : index
    %55 = vector.load %arg9[%c0_21, %c0_22] : memref<8x32xbf16, #tpu.memory_space<vmem>>, vector<8x32xbf16>
    %cst_23 = arith.constant dense<0.000000e+00> : vector<8x32xf32>
    %56 = tpu.matmul %54, %55, %cst_23 {dimension_numbers = #tpu.dot_dimension_numbers<[1], [0], [0], [1], [0, 0, 1, 1], [], []>} : vector<8x8xbf16>, vector<8x32xbf16>, vector<8x32xf32> -> vector<8x32xf32>
    %c0_24 = arith.constant 0 : index
    %c0_25 = arith.constant 0 : index
    %57 = vector.load %arg10[%c0_24, %c0_25] : memref<1x32xf32, #tpu.memory_space<vmem>>, vector<1x32xf32>
    %58 = vector.broadcast %57 : vector<1x32xf32> to vector<8x32xf32>
    %59 = arith.addf %56, %58 : vector<8x32xf32>
    %cst_26 = arith.constant 2.000000e+01 : f32
    %60 = vector.broadcast %cst_26 : f32 to vector<8x32xf32>
    %61 = arith.cmpf ogt, %59, %60 : vector<8x32xf32>
    %cst_27 = arith.constant 2.000000e+01 : f32
    %62 = vector.broadcast %cst_27 : f32 to vector<8x32xf32>
    %63 = arith.minimumf %59, %62 : vector<8x32xf32>
    %64 = math.exp %63 : vector<8x32xf32>
    %65 = math.log1p %64 : vector<8x32xf32>
    %66 = arith.select %61, %59, %65 : vector<8x32xi1>, vector<8x32xf32>
    %c0_28 = arith.constant 0 : index
    %c0_29 = arith.constant 0 : index
    %67 = vector.load %arg18[%c0_28, %c0_29] : memref<8x32xf32, #tpu.memory_space<vmem>>, vector<8x32xf32>
    tpu.vector_store %arg18[%c0_28, %c0_29], %66 {strides = array<i32>} : memref<8x32xf32, #tpu.memory_space<vmem>>, vector<8x32xf32>,
    %c0_30 = arith.constant 0 : index
    %c0_31 = arith.constant 0 : index
    %68 = vector.load %arg19[%c0_30, %c0_31] : memref<8x32xf32, #tpu.memory_space<vmem>>, vector<8x32xf32>
    tpu.vector_store %arg19[%c0_30, %c0_31], %44 {strides = array<i32>} : memref<8x32xf32, #tpu.memory_space<vmem>>, vector<8x32xf32>,
    %c0_32 = arith.constant 0 : index
    %c0_33 = arith.constant 0 : index
    %69 = vector.load %arg20[%c0_32, %c0_33] : memref<8x8xf32, #tpu.memory_space<vmem>>, vector<8x8xf32>
    tpu.vector_store %arg20[%c0_32, %c0_33], %52 {strides = array<i32>} : memref<8x8xf32, #tpu.memory_space<vmem>>, vector<8x8xf32>,
    %c0_34 = arith.constant 0 : index
    %c0_35 = arith.constant 0 : index
    %70 = vector.load %arg21[%c0_34, %c0_35] : memref<8x8xf32, #tpu.memory_space<vmem>>, vector<8x8xf32>
    tpu.vector_store %arg21[%c0_34, %c0_35], %53 {strides = array<i32>} : memref<8x8xf32, #tpu.memory_space<vmem>>, vector<8x8xf32>,
    %c0_36 = arith.constant 0 : index
    %c0_37 = arith.constant 0 : index
    %71 = vector.load %arg13[%c0_36, %c0_37] : memref<8x32xf32, #tpu.memory_space<vmem>>, vector<8x32xf32>
    %72 = tpu.iota {dimensions = array<i32: 0>} : vector<8x8xi32>
    %73 = tpu.iota {dimensions = array<i32: 1>} : vector<8x8xi32>
    %74 = arith.cmpi eq, %72, %73 : vector<8x8xi32>
    %75 = arith.extui %74 : vector<8x8xi1> to vector<8x8xi32>
    %76 = arith.sitofp %75 : vector<8x8xi32> to vector<8x8xf32>
    %c0_38 = arith.constant 0 : index
    %c0_39 = arith.constant 0 : index
    %77 = vector.load %arg16[%c0_38, %c0_39] : memref<8x32xf32, #tpu.memory_space<vmem>>, vector<8x32xf32>
    %c0_i32_40 = arith.constant 0 : i32
    %c8_i32 = arith.constant 8 : i32
    %78 = arith.muli %c0_i32_40, %c8_i32 : i32
    %79 = tpu.assume_multiple %78, 8 : i32
    %80 = arith.index_cast %79 : i32 to index
    %c0_41 = arith.constant 0 : index
    %81 = vector.load %arg18[%80, %c0_41] : memref<8x32xf32, #tpu.memory_space<vmem>>, vector<8x32xf32>
    %82 = arith.index_cast %79 : i32 to index
    %c0_42 = arith.constant 0 : index
    %83 = vector.load %arg19[%82, %c0_42] : memref<8x32xf32, #tpu.memory_space<vmem>>, vector<8x32xf32>
    %84 = arith.mulf %81, %83 : vector<8x32xf32>
    %85 = arith.index_cast %79 : i32 to index
    %c0_43 = arith.constant 0 : index
    %86 = vector.load %arg20[%85, %c0_43] : memref<8x8xf32, #tpu.memory_space<vmem>>, vector<8x8xf32>
    %87 = arith.index_cast %79 : i32 to index
    %c0_44 = arith.constant 0 : index
    %88 = vector.load %arg21[%87, %c0_44] : memref<8x8xf32, #tpu.memory_space<vmem>>, vector<8x8xf32>
    %89 = vector.extract_strided_slice %86 {offsets = [0, 0], sizes = [1, 8], strides = [1, 1]} : vector<8x8xf32> to vector<1x8xf32>
    %90 = vector.shape_cast %89 : vector<1x8xf32> to vector<1x8xf32>
    %91 = vector.broadcast %90 : vector<1x8xf32> to vector<8x8xf32>
    %92 = arith.mulf %91, %76 : vector<8x8xf32>
    %cst_45 = arith.constant dense<0.000000e+00> : vector<8xf32>
    %93 = vector.multi_reduction <add>, %92, %cst_45 [1] : vector<8x8xf32> to vector<8xf32>
    %94 = vector.shape_cast %93 : vector<8xf32> to vector<8x1xf32>
    %95 = vector.extract_strided_slice %88 {offsets = [0, 0], sizes = [1, 8], strides = [1, 1]} : vector<8x8xf32> to vector<1x8xf32>
    %96 = vector.shape_cast %95 : vector<1x8xf32> to vector<1x8xf32>
    %97 = vector.broadcast %96 : vector<1x8xf32> to vector<8x8xf32>
    %98 = arith.mulf %97, %76 : vector<8x8xf32>
    %cst_46 = arith.constant dense<0.000000e+00> : vector<8xf32>
    %99 = vector.multi_reduction <add>, %98, %cst_46 [1] : vector<8x8xf32> to vector<8xf32>
    %100 = vector.shape_cast %99 : vector<8xf32> to vector<8x1xf32>
    %101 = vector.extract_strided_slice %81 {offsets = [0, 0], sizes = [1, 32], strides = [1, 1]} : vector<8x32xf32> to vector<1x32xf32>
    %102 = vector.broadcast %101 : vector<1x32xf32> to vector<8x32xf32>
    %103 = arith.mulf %102, %71 : vector<8x32xf32>
    %104 = math.exp %103 : vector<8x32xf32>
    %105 = arith.mulf %104, %77 : vector<8x32xf32>
    %106 = vector.extract_strided_slice %84 {offsets = [0, 0], sizes = [1, 32], strides = [1, 1]} : vector<8x32xf32> to vector<1x32xf32>
    %107 = vector.broadcast %94 : vector<8x1xf32> to vector<8x32xf32>
    %108 = vector.broadcast %106 : vector<1x32xf32> to vector<8x32xf32>
    %109 = arith.mulf %107, %108 : vector<8x32xf32>
    %110 = arith.addf %105, %109 : vector<8x32xf32>
    %111 = vector.broadcast %100 : vector<8x1xf32> to vector<8x32xf32>
    %112 = arith.mulf %110, %111 : vector<8x32xf32>
    %cst_47 = arith.constant dense<0.000000e+00> : vector<32xf32>
    %113 = vector.multi_reduction <add>, %112, %cst_47 [0] : vector<8x32xf32> to vector<32xf32>
    %114 = vector.shape_cast %113 : vector<32xf32> to vector<1x32xf32>
    %115 = vector.extract_strided_slice %86 {offsets = [1, 0], sizes = [1, 8], strides = [1, 1]} : vector<8x8xf32> to vector<1x8xf32>
    %116 = vector.shape_cast %115 : vector<1x8xf32> to vector<1x8xf32>
    %117 = vector.broadcast %116 : vector<1x8xf32> to vector<8x8xf32>
    %118 = arith.mulf %117, %76 : vector<8x8xf32>
    %cst_48 = arith.constant dense<0.000000e+00> : vector<8xf32>
    %119 = vector.multi_reduction <add>, %118, %cst_48 [1] : vector<8x8xf32> to vector<8xf32>
    %120 = vector.shape_cast %119 : vector<8xf32> to vector<8x1xf32>
    %121 = vector.extract_strided_slice %88 {offsets = [1, 0], sizes = [1, 8], strides = [1, 1]} : vector<8x8xf32> to vector<1x8xf32>
    %122 = vector.shape_cast %121 : vector<1x8xf32> to vector<1x8xf32>
    %123 = vector.broadcast %122 : vector<1x8xf32> to vector<8x8xf32>
    %124 = arith.mulf %123, %76 : vector<8x8xf32>
    %cst_49 = arith.constant dense<0.000000e+00> : vector<8xf32>
    %125 = vector.multi_reduction <add>, %124, %cst_49 [1] : vector<8x8xf32> to vector<8xf32>
    %126 = vector.shape_cast %125 : vector<8xf32> to vector<8x1xf32>
    %127 = vector.extract_strided_slice %81 {offsets = [1, 0], sizes = [1, 32], strides = [1, 1]} : vector<8x32xf32> to vector<1x32xf32>
    %128 = vector.broadcast %127 : vector<1x32xf32> to vector<8x32xf32>
    %129 = arith.mulf %128, %71 : vector<8x32xf32>
    %130 = math.exp %129 : vector<8x32xf32>
    %131 = arith.mulf %130, %110 : vector<8x32xf32>
    %132 = vector.extract_strided_slice %84 {offsets = [1, 0], sizes = [1, 32], strides = [1, 1]} : vector<8x32xf32> to vector<1x32xf32>
    %133 = vector.broadcast %120 : vector<8x1xf32> to vector<8x32xf32>
    %134 = vector.broadcast %132 : vector<1x32xf32> to vector<8x32xf32>
    %135 = arith.mulf %133, %134 : vector<8x32xf32>
    %136 = arith.addf %131, %135 : vector<8x32xf32>
    %137 = vector.broadcast %126 : vector<8x1xf32> to vector<8x32xf32>
    %138 = arith.mulf %136, %137 : vector<8x32xf32>
    %cst_50 = arith.constant dense<0.000000e+00> : vector<32xf32>
    %139 = vector.multi_reduction <add>, %138, %cst_50 [0] : vector<8x32xf32> to vector<32xf32>
    %140 = vector.shape_cast %139 : vector<32xf32> to vector<1x32xf32>
    %141 = vector.extract_strided_slice %86 {offsets = [2, 0], sizes = [1, 8], strides = [1, 1]} : vector<8x8xf32> to vector<1x8xf32>
    %142 = vector.shape_cast %141 : vector<1x8xf32> to vector<1x8xf32>
    %143 = vector.broadcast %142 : vector<1x8xf32> to vector<8x8xf32>
    %144 = arith.mulf %143, %76 : vector<8x8xf32>
    %cst_51 = arith.constant dense<0.000000e+00> : vector<8xf32>
    %145 = vector.multi_reduction <add>, %144, %cst_51 [1] : vector<8x8xf32> to vector<8xf32>
    %146 = vector.shape_cast %145 : vector<8xf32> to vector<8x1xf32>
    %147 = vector.extract_strided_slice %88 {offsets = [2, 0], sizes = [1, 8], strides = [1, 1]} : vector<8x8xf32> to vector<1x8xf32>
    %148 = vector.shape_cast %147 : vector<1x8xf32> to vector<1x8xf32>
    %149 = vector.broadcast %148 : vector<1x8xf32> to vector<8x8xf32>
    %150 = arith.mulf %149, %76 : vector<8x8xf32>
    %cst_52 = arith.constant dense<0.000000e+00> : vector<8xf32>
    %151 = vector.multi_reduction <add>, %150, %cst_52 [1] : vector<8x8xf32> to vector<8xf32>
    %152 = vector.shape_cast %151 : vector<8xf32> to vector<8x1xf32>
    %153 = vector.extract_strided_slice %81 {offsets = [2, 0], sizes = [1, 32], strides = [1, 1]} : vector<8x32xf32> to vector<1x32xf32>
    %154 = vector.broadcast %153 : vector<1x32xf32> to vector<8x32xf32>
    %155 = arith.mulf %154, %71 : vector<8x32xf32>
    %156 = math.exp %155 : vector<8x32xf32>
    %157 = arith.mulf %156, %136 : vector<8x32xf32>
    %158 = vector.extract_strided_slice %84 {offsets = [2, 0], sizes = [1, 32], strides = [1, 1]} : vector<8x32xf32> to vector<1x32xf32>
    %159 = vector.broadcast %146 : vector<8x1xf32> to vector<8x32xf32>
    %160 = vector.broadcast %158 : vector<1x32xf32> to vector<8x32xf32>
    %161 = arith.mulf %159, %160 : vector<8x32xf32>
    %162 = arith.addf %157, %161 : vector<8x32xf32>
    %163 = vector.broadcast %152 : vector<8x1xf32> to vector<8x32xf32>
    %164 = arith.mulf %162, %163 : vector<8x32xf32>
    %cst_53 = arith.constant dense<0.000000e+00> : vector<32xf32>
    %165 = vector.multi_reduction <add>, %164, %cst_53 [0] : vector<8x32xf32> to vector<32xf32>
    %166 = vector.shape_cast %165 : vector<32xf32> to vector<1x32xf32>
    %167 = vector.extract_strided_slice %86 {offsets = [3, 0], sizes = [1, 8], strides = [1, 1]} : vector<8x8xf32> to vector<1x8xf32>
    %168 = vector.shape_cast %167 : vector<1x8xf32> to vector<1x8xf32>
    %169 = vector.broadcast %168 : vector<1x8xf32> to vector<8x8xf32>
    %170 = arith.mulf %169, %76 : vector<8x8xf32>
    %cst_54 = arith.constant dense<0.000000e+00> : vector<8xf32>
    %171 = vector.multi_reduction <add>, %170, %cst_54 [1] : vector<8x8xf32> to vector<8xf32>
    %172 = vector.shape_cast %171 : vector<8xf32> to vector<8x1xf32>
    %173 = vector.extract_strided_slice %88 {offsets = [3, 0], sizes = [1, 8], strides = [1, 1]} : vector<8x8xf32> to vector<1x8xf32>
    %174 = vector.shape_cast %173 : vector<1x8xf32> to vector<1x8xf32>
    %175 = vector.broadcast %174 : vector<1x8xf32> to vector<8x8xf32>
    %176 = arith.mulf %175, %76 : vector<8x8xf32>
    %cst_55 = arith.constant dense<0.000000e+00> : vector<8xf32>
    %177 = vector.multi_reduction <add>, %176, %cst_55 [1] : vector<8x8xf32> to vector<8xf32>
    %178 = vector.shape_cast %177 : vector<8xf32> to vector<8x1xf32>
    %179 = vector.extract_strided_slice %81 {offsets = [3, 0], sizes = [1, 32], strides = [1, 1]} : vector<8x32xf32> to vector<1x32xf32>
    %180 = vector.broadcast %179 : vector<1x32xf32> to vector<8x32xf32>
    %181 = arith.mulf %180, %71 : vector<8x32xf32>
    %182 = math.exp %181 : vector<8x32xf32>
    %183 = arith.mulf %182, %162 : vector<8x32xf32>
    %184 = vector.extract_strided_slice %84 {offsets = [3, 0], sizes = [1, 32], strides = [1, 1]} : vector<8x32xf32> to vector<1x32xf32>
    %185 = vector.broadcast %172 : vector<8x1xf32> to vector<8x32xf32>
    %186 = vector.broadcast %184 : vector<1x32xf32> to vector<8x32xf32>
    %187 = arith.mulf %185, %186 : vector<8x32xf32>
    %188 = arith.addf %183, %187 : vector<8x32xf32>
    %189 = vector.broadcast %178 : vector<8x1xf32> to vector<8x32xf32>
    %190 = arith.mulf %188, %189 : vector<8x32xf32>
    %cst_56 = arith.constant dense<0.000000e+00> : vector<32xf32>
    %191 = vector.multi_reduction <add>, %190, %cst_56 [0] : vector<8x32xf32> to vector<32xf32>
    %192 = vector.shape_cast %191 : vector<32xf32> to vector<1x32xf32>
    %193 = vector.extract_strided_slice %86 {offsets = [4, 0], sizes = [1, 8], strides = [1, 1]} : vector<8x8xf32> to vector<1x8xf32>
    %194 = vector.shape_cast %193 : vector<1x8xf32> to vector<1x8xf32>
    %195 = vector.broadcast %194 : vector<1x8xf32> to vector<8x8xf32>
    %196 = arith.mulf %195, %76 : vector<8x8xf32>
    %cst_57 = arith.constant dense<0.000000e+00> : vector<8xf32>
    %197 = vector.multi_reduction <add>, %196, %cst_57 [1] : vector<8x8xf32> to vector<8xf32>
    %198 = vector.shape_cast %197 : vector<8xf32> to vector<8x1xf32>
    %199 = vector.extract_strided_slice %88 {offsets = [4, 0], sizes = [1, 8], strides = [1, 1]} : vector<8x8xf32> to vector<1x8xf32>
    %200 = vector.shape_cast %199 : vector<1x8xf32> to vector<1x8xf32>
    %201 = vector.broadcast %200 : vector<1x8xf32> to vector<8x8xf32>
    %202 = arith.mulf %201, %76 : vector<8x8xf32>
    %cst_58 = arith.constant dense<0.000000e+00> : vector<8xf32>
    %203 = vector.multi_reduction <add>, %202, %cst_58 [1] : vector<8x8xf32> to vector<8xf32>
    %204 = vector.shape_cast %203 : vector<8xf32> to vector<8x1xf32>
    %205 = vector.extract_strided_slice %81 {offsets = [4, 0], sizes = [1, 32], strides = [1, 1]} : vector<8x32xf32> to vector<1x32xf32>
    %206 = vector.broadcast %205 : vector<1x32xf32> to vector<8x32xf32>
    %207 = arith.mulf %206, %71 : vector<8x32xf32>
    %208 = math.exp %207 : vector<8x32xf32>
    %209 = arith.mulf %208, %188 : vector<8x32xf32>
    %210 = vector.extract_strided_slice %84 {offsets = [4, 0], sizes = [1, 32], strides = [1, 1]} : vector<8x32xf32> to vector<1x32xf32>
    %211 = vector.broadcast %198 : vector<8x1xf32> to vector<8x32xf32>
    %212 = vector.broadcast %210 : vector<1x32xf32> to vector<8x32xf32>
    %213 = arith.mulf %211, %212 : vector<8x32xf32>
    %214 = arith.addf %209, %213 : vector<8x32xf32>
    %215 = vector.broadcast %204 : vector<8x1xf32> to vector<8x32xf32>
    %216 = arith.mulf %214, %215 : vector<8x32xf32>
    %cst_59 = arith.constant dense<0.000000e+00> : vector<32xf32>
    %217 = vector.multi_reduction <add>, %216, %cst_59 [0] : vector<8x32xf32> to vector<32xf32>
    %218 = vector.shape_cast %217 : vector<32xf32> to vector<1x32xf32>
    %219 = vector.extract_strided_slice %86 {offsets = [5, 0], sizes = [1, 8], strides = [1, 1]} : vector<8x8xf32> to vector<1x8xf32>
    %220 = vector.shape_cast %219 : vector<1x8xf32> to vector<1x8xf32>
    %221 = vector.broadcast %220 : vector<1x8xf32> to vector<8x8xf32>
    %222 = arith.mulf %221, %76 : vector<8x8xf32>
    %cst_60 = arith.constant dense<0.000000e+00> : vector<8xf32>
    %223 = vector.multi_reduction <add>, %222, %cst_60 [1] : vector<8x8xf32> to vector<8xf32>
    %224 = vector.shape_cast %223 : vector<8xf32> to vector<8x1xf32>
    %225 = vector.extract_strided_slice %88 {offsets = [5, 0], sizes = [1, 8], strides = [1, 1]} : vector<8x8xf32> to vector<1x8xf32>
    %226 = vector.shape_cast %225 : vector<1x8xf32> to vector<1x8xf32>
    %227 = vector.broadcast %226 : vector<1x8xf32> to vector<8x8xf32>
    %228 = arith.mulf %227, %76 : vector<8x8xf32>
    %cst_61 = arith.constant dense<0.000000e+00> : vector<8xf32>
    %229 = vector.multi_reduction <add>, %228, %cst_61 [1] : vector<8x8xf32> to vector<8xf32>
    %230 = vector.shape_cast %229 : vector<8xf32> to vector<8x1xf32>
    %231 = vector.extract_strided_slice %81 {offsets = [5, 0], sizes = [1, 32], strides = [1, 1]} : vector<8x32xf32> to vector<1x32xf32>
    %232 = vector.broadcast %231 : vector<1x32xf32> to vector<8x32xf32>
    %233 = arith.mulf %232, %71 : vector<8x32xf32>
    %234 = math.exp %233 : vector<8x32xf32>
    %235 = arith.mulf %234, %214 : vector<8x32xf32>
    %236 = vector.extract_strided_slice %84 {offsets = [5, 0], sizes = [1, 32], strides = [1, 1]} : vector<8x32xf32> to vector<1x32xf32>
    %237 = vector.broadcast %224 : vector<8x1xf32> to vector<8x32xf32>
    %238 = vector.broadcast %236 : vector<1x32xf32> to vector<8x32xf32>
    %239 = arith.mulf %237, %238 : vector<8x32xf32>
    %240 = arith.addf %235, %239 : vector<8x32xf32>
    %241 = vector.broadcast %230 : vector<8x1xf32> to vector<8x32xf32>
    %242 = arith.mulf %240, %241 : vector<8x32xf32>
    %cst_62 = arith.constant dense<0.000000e+00> : vector<32xf32>
    %243 = vector.multi_reduction <add>, %242, %cst_62 [0] : vector<8x32xf32> to vector<32xf32>
    %244 = vector.shape_cast %243 : vector<32xf32> to vector<1x32xf32>
    %245 = vector.extract_strided_slice %86 {offsets = [6, 0], sizes = [1, 8], strides = [1, 1]} : vector<8x8xf32> to vector<1x8xf32>
    %246 = vector.shape_cast %245 : vector<1x8xf32> to vector<1x8xf32>
    %247 = vector.broadcast %246 : vector<1x8xf32> to vector<8x8xf32>
    %248 = arith.mulf %247, %76 : vector<8x8xf32>
    %cst_63 = arith.constant dense<0.000000e+00> : vector<8xf32>
    %249 = vector.multi_reduction <add>, %248, %cst_63 [1] : vector<8x8xf32> to vector<8xf32>
    %250 = vector.shape_cast %249 : vector<8xf32> to vector<8x1xf32>
    %251 = vector.extract_strided_slice %88 {offsets = [6, 0], sizes = [1, 8], strides = [1, 1]} : vector<8x8xf32> to vector<1x8xf32>
    %252 = vector.shape_cast %251 : vector<1x8xf32> to vector<1x8xf32>
    %253 = vector.broadcast %252 : vector<1x8xf32> to vector<8x8xf32>
    %254 = arith.mulf %253, %76 : vector<8x8xf32>
    %cst_64 = arith.constant dense<0.000000e+00> : vector<8xf32>
    %255 = vector.multi_reduction <add>, %254, %cst_64 [1] : vector<8x8xf32> to vector<8xf32>
    %256 = vector.shape_cast %255 : vector<8xf32> to vector<8x1xf32>
    %257 = vector.extract_strided_slice %81 {offsets = [6, 0], sizes = [1, 32], strides = [1, 1]} : vector<8x32xf32> to vector<1x32xf32>
    %258 = vector.broadcast %257 : vector<1x32xf32> to vector<8x32xf32>
    %259 = arith.mulf %258, %71 : vector<8x32xf32>
    %260 = math.exp %259 : vector<8x32xf32>
    %261 = arith.mulf %260, %240 : vector<8x32xf32>
    %262 = vector.extract_strided_slice %84 {offsets = [6, 0], sizes = [1, 32], strides = [1, 1]} : vector<8x32xf32> to vector<1x32xf32>
    %263 = vector.broadcast %250 : vector<8x1xf32> to vector<8x32xf32>
    %264 = vector.broadcast %262 : vector<1x32xf32> to vector<8x32xf32>
    %265 = arith.mulf %263, %264 : vector<8x32xf32>
    %266 = arith.addf %261, %265 : vector<8x32xf32>
    %267 = vector.broadcast %256 : vector<8x1xf32> to vector<8x32xf32>
    %268 = arith.mulf %266, %267 : vector<8x32xf32>
    %cst_65 = arith.constant dense<0.000000e+00> : vector<32xf32>
    %269 = vector.multi_reduction <add>, %268, %cst_65 [0] : vector<8x32xf32> to vector<32xf32>
    %270 = vector.shape_cast %269 : vector<32xf32> to vector<1x32xf32>
    %271 = vector.extract_strided_slice %86 {offsets = [7, 0], sizes = [1, 8], strides = [1, 1]} : vector<8x8xf32> to vector<1x8xf32>
    %272 = vector.shape_cast %271 : vector<1x8xf32> to vector<1x8xf32>
    %273 = vector.broadcast %272 : vector<1x8xf32> to vector<8x8xf32>
    %274 = arith.mulf %273, %76 : vector<8x8xf32>
    %cst_66 = arith.constant dense<0.000000e+00> : vector<8xf32>
    %275 = vector.multi_reduction <add>, %274, %cst_66 [1] : vector<8x8xf32> to vector<8xf32>
    %276 = vector.shape_cast %275 : vector<8xf32> to vector<8x1xf32>
    %277 = vector.extract_strided_slice %88 {offsets = [7, 0], sizes = [1, 8], strides = [1, 1]} : vector<8x8xf32> to vector<1x8xf32>
    %278 = vector.shape_cast %277 : vector<1x8xf32> to vector<1x8xf32>
    %279 = vector.broadcast %278 : vector<1x8xf32> to vector<8x8xf32>
    %280 = arith.mulf %279, %76 : vector<8x8xf32>
    %cst_67 = arith.constant dense<0.000000e+00> : vector<8xf32>
    %281 = vector.multi_reduction <add>, %280, %cst_67 [1] : vector<8x8xf32> to vector<8xf32>
    %282 = vector.shape_cast %281 : vector<8xf32> to vector<8x1xf32>
    %283 = vector.extract_strided_slice %81 {offsets = [7, 0], sizes = [1, 32], strides = [1, 1]} : vector<8x32xf32> to vector<1x32xf32>
    %284 = vector.broadcast %283 : vector<1x32xf32> to vector<8x32xf32>
    %285 = arith.mulf %284, %71 : vector<8x32xf32>
    %286 = math.exp %285 : vector<8x32xf32>
    %287 = arith.mulf %286, %266 : vector<8x32xf32>
    %288 = vector.extract_strided_slice %84 {offsets = [7, 0], sizes = [1, 32], strides = [1, 1]} : vector<8x32xf32> to vector<1x32xf32>
    %289 = vector.broadcast %276 : vector<8x1xf32> to vector<8x32xf32>
    %290 = vector.broadcast %288 : vector<1x32xf32> to vector<8x32xf32>
    %291 = arith.mulf %289, %290 : vector<8x32xf32>
    %292 = arith.addf %287, %291 : vector<8x32xf32>
    %293 = vector.broadcast %282 : vector<8x1xf32> to vector<8x32xf32>
    %294 = arith.mulf %292, %293 : vector<8x32xf32>
    %cst_68 = arith.constant dense<0.000000e+00> : vector<32xf32>
    %295 = vector.multi_reduction <add>, %294, %cst_68 [0] : vector<8x32xf32> to vector<32xf32>
    %296 = vector.shape_cast %295 : vector<32xf32> to vector<1x32xf32>
    %297 = tpu.concatenate %114, %140, %166, %192, %218, %244, %270, %296 in 0 : vector<1x32xf32>, vector<1x32xf32>, vector<1x32xf32>, vector<1x32xf32>, vector<1x32xf32>, vector<1x32xf32>, vector<1x32xf32>, vector<1x32xf32> -> vector<8x32xf32>
    %298 = arith.index_cast %79 : i32 to index
    %c0_69 = arith.constant 0 : index
    %299 = vector.load %arg22[%298, %c0_69] : memref<8x32xf32, #tpu.memory_space<vmem>>, vector<8x32xf32>
    tpu.vector_store %arg22[%298, %c0_69], %297 {strides = array<i32>} : memref<8x32xf32, #tpu.memory_space<vmem>>, vector<8x32xf32>,
    %c1_i32 = arith.constant 1 : i32
    %c0_70 = arith.constant 0 : index
    %c0_71 = arith.constant 0 : index
    %300 = vector.load %arg16[%c0_70, %c0_71] : memref<8x32xf32, #tpu.memory_space<vmem>>, vector<8x32xf32>
    tpu.vector_store %arg16[%c0_70, %c0_71], %292 {strides = array<i32>} : memref<8x32xf32, #tpu.memory_space<vmem>>, vector<8x32xf32>,
    %c0_72 = arith.constant 0 : index
    %c0_73 = arith.constant 0 : index
    %301 = vector.load %arg22[%c0_72, %c0_73] : memref<8x32xf32, #tpu.memory_space<vmem>>, vector<8x32xf32>
    %c0_74 = arith.constant 0 : index
    %c0_75 = arith.constant 0 : index
    %302 = vector.load %arg19[%c0_74, %c0_75] : memref<8x32xf32, #tpu.memory_space<vmem>>, vector<8x32xf32>
    %c0_76 = arith.constant 0 : index
    %c0_77 = arith.constant 0 : index
    %303 = vector.load %arg14[%c0_76, %c0_77] : memref<1x32xf32, #tpu.memory_space<vmem>>, vector<1x32xf32>
    %304 = vector.broadcast %303 : vector<1x32xf32> to vector<8x32xf32>
    %305 = arith.mulf %302, %304 : vector<8x32xf32>
    %306 = arith.addf %301, %305 : vector<8x32xf32>
    %307 = arith.negf %11 : vector<8x32xf32>
    %308 = math.exp %307 : vector<8x32xf32>
    %cst_78 = arith.constant 1.000000e+00 : f32
    %309 = vector.broadcast %cst_78 : f32 to vector<8x32xf32>
    %310 = arith.addf %309, %308 : vector<8x32xf32>
    %311 = arith.divf %309, %310 : vector<8x32xf32>
    %312 = arith.mulf %11, %311 : vector<8x32xf32>
    %313 = arith.mulf %306, %312 : vector<8x32xf32>
    %314 = arith.truncf %313 : vector<8x32xf32> to vector<8x32xbf16>
    %c0_79 = arith.constant 0 : index
    %c0_80 = arith.constant 0 : index
    %315 = vector.load %arg11[%c0_79, %c0_80] : memref<32x32xbf16, #tpu.memory_space<vmem>>, vector<32x32xbf16>
    %cst_81 = arith.constant dense<0.000000e+00> : vector<8x32xf32>
    %316 = tpu.matmul %314, %315, %cst_81 {dimension_numbers = #tpu.dot_dimension_numbers<[1], [0], [0], [1], [0, 0, 1, 1], [], []>} : vector<8x32xbf16>, vector<32x32xbf16>, vector<8x32xf32> -> vector<8x32xf32>
    %c0_82 = arith.constant 0 : index
    %c0_83 = arith.constant 0 : index
    %317 = vector.load %arg12[%c0_82, %c0_83] : memref<1x32xf32, #tpu.memory_space<vmem>>, vector<1x32xf32>
    %318 = vector.broadcast %317 : vector<1x32xf32> to vector<8x32xf32>
    %319 = arith.addf %316, %318 : vector<8x32xf32>
    %c0_84 = arith.constant 0 : index
    %c0_85 = arith.constant 0 : index
    %c0_86 = arith.constant 0 : index
    %320 = vector.load %arg15[%c0_84, %c0_85, %c0_86] : memref<1x8x32xf32, #tpu.memory_space<vmem>>, vector<1x8x32xf32>
    %321 = vector.shape_cast %320 : vector<1x8x32xf32> to vector<8x32xf32>
    %322 = vector.shape_cast %319 : vector<8x32xf32> to vector<1x8x32xf32>
    tpu.vector_store %arg15[%c0_84, %c0_85, %c0_86], %322 {strides = array<i32>} : memref<1x8x32xf32, #tpu.memory_space<vmem>>, vector<1x8x32xf32>,
    return
  }
  func.func @transform_0(%arg0: i32, %arg1: i32) -> (i32, i32, i32) {
    %c0_i32 = arith.constant 0 : i32
    %c0_i32_0 = arith.constant 0 : i32
    return %arg0, %arg1, %c0_i32 : i32, i32, i32
  }
  func.func @transform_1(%arg0: i32, %arg1: i32) -> (i32, i32) {
    %c0_i32 = arith.constant 0 : i32
    %c0_i32_0 = arith.constant 0 : i32
    %c0_i32_1 = arith.constant 0 : i32
    return %c0_i32, %c0_i32_0 : i32, i32
  }
  func.func @transform_2(%arg0: i32, %arg1: i32) -> (i32, i32) {
    %c0_i32 = arith.constant 0 : i32
    %c0_i32_0 = arith.constant 0 : i32
    %c0_i32_1 = arith.constant 0 : i32
    return %c0_i32, %c0_i32_0 : i32, i32
  }
  func.func @transform_3(%arg0: i32, %arg1: i32) -> (i32, i32) {
    %c0_i32 = arith.constant 0 : i32
    %c0_i32_0 = arith.constant 0 : i32
    %c0_i32_1 = arith.constant 0 : i32
    return %c0_i32, %c0_i32_0 : i32, i32
  }
  func.func @transform_4(%arg0: i32, %arg1: i32) -> (i32, i32) {
    %c0_i32 = arith.constant 0 : i32
    %c0_i32_0 = arith.constant 0 : i32
    %c0_i32_1 = arith.constant 0 : i32
    return %c0_i32, %c0_i32_0 : i32, i32
  }
  func.func @transform_5(%arg0: i32, %arg1: i32) -> (i32, i32) {
    %c0_i32 = arith.constant 0 : i32
    %c0_i32_0 = arith.constant 0 : i32
    %c0_i32_1 = arith.constant 0 : i32
    return %c0_i32, %c0_i32_0 : i32, i32
  }
  func.func @transform_6(%arg0: i32, %arg1: i32) -> (i32, i32) {
    %c0_i32 = arith.constant 0 : i32
    %c0_i32_0 = arith.constant 0 : i32
    %c0_i32_1 = arith.constant 0 : i32
    return %c0_i32, %c0_i32_0 : i32, i32
  }
  func.func @transform_7(%arg0: i32, %arg1: i32) -> (i32, i32) {
    %c0_i32 = arith.constant 0 : i32
    %c0_i32_0 = arith.constant 0 : i32
    %c0_i32_1 = arith.constant 0 : i32
    return %c0_i32, %c0_i32_0 : i32, i32
  }
  func.func @transform_8(%arg0: i32, %arg1: i32) -> (i32, i32) {
    %c0_i32 = arith.constant 0 : i32
    %c0_i32_0 = arith.constant 0 : i32
    %c0_i32_1 = arith.constant 0 : i32
    return %c0_i32, %c0_i32_0 : i32, i32
  }
  func.func @transform_9(%arg0: i32, %arg1: i32) -> (i32, i32) {
    %c0_i32 = arith.constant 0 : i32
    %c0_i32_0 = arith.constant 0 : i32
    %c0_i32_1 = arith.constant 0 : i32
    return %c0_i32, %c0_i32_0 : i32, i32
  }
  func.func @transform_10(%arg0: i32, %arg1: i32) -> (i32, i32) {
    %c0_i32 = arith.constant 0 : i32
    %c0_i32_0 = arith.constant 0 : i32
    %c0_i32_1 = arith.constant 0 : i32
    return %c0_i32, %c0_i32_0 : i32, i32
  }
  func.func @transform_11(%arg0: i32, %arg1: i32) -> (i32, i32) {
    %c0_i32 = arith.constant 0 : i32
    %c0_i32_0 = arith.constant 0 : i32
    %c0_i32_1 = arith.constant 0 : i32
    return %c0_i32, %c0_i32_0 : i32, i32
  }
  func.func @transform_12(%arg0: i32, %arg1: i32) -> (i32, i32) {
    %c0_i32 = arith.constant 0 : i32
    %c0_i32_0 = arith.constant 0 : i32
    %c0_i32_1 = arith.constant 0 : i32
    return %c0_i32, %c0_i32_0 : i32, i32
  }
  func.func @transform_13(%arg0: i32, %arg1: i32) -> (i32, i32, i32) {
    %c0_i32 = arith.constant 0 : i32
    %c0_i32_0 = arith.constant 0 : i32
    return %arg0, %arg1, %c0_i32 : i32, i32, i32
  }
}

</mosaic_0001>

<llo_original>
// kernel: tpu_custom_call.1
$region0: #{tpu_custom_call.1}
  #allocation0 [shape = 'u32[]', space=smem, size = 0x4, offset = 0x4, fixed_abs, tag = 'smem constant byte address 0x4 - core index']
  #allocation1 [shape = 'u32[144,128]{1,0:T(1,128)}', space=vmem, size = 0x12000, scoped, tag = 'internal scratch']
  #allocation2 [shape = 'f32[8,32]{1,0:T(8,128)}', space=vmem, size = 0x1000, scoped, tag = 'scratch operand']
  #allocation3 [shape = 'f32[3,32]{1,0:T(4,128)}', space=vmem, size = 0x800, scoped, tag = 'scratch operand']
  #allocation4 [shape = 'f32[8,32]{1,0:T(8,128)}', space=vmem, size = 0x1000, scoped, tag = 'scratch operand']
  #allocation5 [shape = 'f32[8,32]{1,0:T(8,128)}', space=vmem, size = 0x1000, scoped, tag = 'scratch operand']
  #allocation6 [shape = 'f32[8,8]{1,0:T(8,128)}', space=vmem, size = 0x1000, scoped, tag = 'scratch operand']
  #allocation7 [shape = 'f32[8,8]{1,0:T(8,128)}', space=vmem, size = 0x1000, scoped, tag = 'scratch operand']
  #allocation8 [shape = 'f32[8,32]{1,0:T(8,128)}', space=vmem, size = 0x1000, scoped, tag = 'scratch operand']
  %s0 = inlined_call_operand.hbm [shape: bf16[2,8,32], index: 0, kind: input, shape index: {}]
  %s1 = inlined_call_operand.hbm [shape: bf16[32,64], index: 1, kind: input, shape index: {}]
  %s2 = inlined_call_operand.hbm [shape: f32[1,64], index: 2, kind: input, shape index: {}]
  %s3 = inlined_call_operand.hbm [shape: f32[4,32], index: 3, kind: input, shape index: {}]
  %s4 = inlined_call_operand.hbm [shape: f32[1,32], index: 4, kind: input, shape index: {}]
  %s5 = inlined_call_operand.hbm [shape: bf16[32,24], index: 5, kind: input, shape index: {}]
  %s6 = inlined_call_operand.hbm [shape: f32[1,24], index: 6, kind: input, shape index: {}]
  %s7 = inlined_call_operand.hbm [shape: bf16[8,32], index: 7, kind: input, shape index: {}]
  %s8 = inlined_call_operand.hbm [shape: f32[1,32], index: 8, kind: input, shape index: {}]
  %s9 = inlined_call_operand.hbm [shape: bf16[32,32], index: 9, kind: input, shape index: {}]
  %s10 = inlined_call_operand.hbm [shape: f32[1,32], index: 10, kind: input, shape index: {}]
  %s11 = inlined_call_operand.hbm [shape: f32[8,32], index: 11, kind: input, shape index: {}]
  %s12 = inlined_call_operand.hbm [shape: f32[1,32], index: 12, kind: input, shape index: {}]
  %s13 = inlined_call_operand.hbm [shape: f32[2,8,32], index: 13, kind: output, shape index: {}]
  %s14 = sld [smem:[#allocation0]]
  $region141: #{tpu_custom_call.1} parent=0
    _
  %s16 = ssub.s32 1, %s14
  %s17 = scalar_select 0, %s16, %s14
  $region1: #{tpu_custom_call.1} parent=0
    #allocation9 [shape = 'u8[4096]{0}', space=vmem, size = 0x1000, scoped, tag = 'input window, operand 0']
    #allocation10 [shape = 's32[2]{0}', space=sflag, size = 0x8, scoped, tag = 'scoped memory for tpu_custom_call.1']
    #allocation11 [shape = 's32[2]{0}', space=sflag, size = 0x8, scoped, tag = 'scoped memory for tpu_custom_call.1']
    #allocation12 [shape = 'u8[8192]{0}', space=vmem, size = 0x2000, scoped, tag = 'input window, operand 1, single buffered']
    #allocation13 [shape = 's32[1]{0}', space=sflag, size = 0x4, scoped, tag = 'scoped memory for tpu_custom_call.1']
    #allocation14 [shape = 'u8[512]{0}', space=vmem, size = 0x400, scoped, tag = 'input window, operand 2, single buffered']
    #allocation15 [shape = 'u8[2048]{0}', space=vmem, size = 0x800, scoped, tag = 'input window, operand 3, single buffered']
    #allocation16 [shape = 's32[1]{0}', space=sflag, size = 0x4, scoped, tag = 'scoped memory for tpu_custom_call.1']
    #allocation17 [shape = 'u8[512]{0}', space=vmem, size = 0x400, scoped, tag = 'input window, operand 4, single buffered']
    #allocation18 [shape = 'u8[8192]{0}', space=vmem, size = 0x2000, scoped, tag = 'input window, operand 5, single buffered']
    #allocation19 [shape = 's32[1]{0}', space=sflag, size = 0x4, scoped, tag = 'scoped memory for tpu_custom_call.1']
    #allocation20 [shape = 'u8[512]{0}', space=vmem, size = 0x400, scoped, tag = 'input window, operand 6, single buffered']
    #allocation21 [shape = 'u8[2048]{0}', space=vmem, size = 0x800, scoped, tag = 'input window, operand 7, single buffered']
    #allocation22 [shape = 's32[1]{0}', space=sflag, size = 0x4, scoped, tag = 'scoped memory for tpu_custom_call.1']
    #allocation23 [shape = 'u8[512]{0}', space=vmem, size = 0x400, scoped, tag = 'input window, operand 8, single buffered']
    #allocation24 [shape = 'u8[8192]{0}', space=vmem, size = 0x2000, scoped, tag = 'input window, operand 9, single buffered']
    #allocation25 [shape = 's32[1]{0}', space=sflag, size = 0x4, scoped, tag = 'scoped memory for tpu_custom_call.1']
    #allocation26 [shape = 'u8[512]{0}', space=vmem, size = 0x400, scoped, tag = 'input window, operand 10, single buffered']
    #allocation27 [shape = 'u8[4096]{0}', space=vmem, size = 0x1000, scoped, tag = 'input window, operand 11, single buffered']
    #allocation28 [shape = 's32[1]{0}', space=sflag, size = 0x4, scoped, tag = 'scoped memory for tpu_custom_call.1']
    #allocation29 [shape = 'u8[512]{0}', space=vmem, size = 0x400, scoped, tag = 'input window, operand 12, single buffered']
    #allocation30 [shape = 'u8[8192]{0}', space=vmem, size = 0x2000, scoped, tag = 'output window, operand 0']
    %18 = vsyncpa [#allocation10], 0
    %s19 = scalar_lea.sflag [#allocation10], 1
    %20 = vsyncpa %s19, 0
    %21 = vsyncpa [#allocation13], 0
    %22 = vsyncpa [#allocation16], 0
    %23 = vsyncpa [#allocation19], 0
    %24 = vsyncpa [#allocation22], 0
    %25 = vsyncpa [#allocation25], 0
    %26 = vsyncpa [#allocation28], 0
    %27 = vsyncpa [#allocation11], 0
    %s28 = scalar_lea.sflag [#allocation11], 1
    %29 = vsyncpa %s28, 0
    loop: start=0, step=1, limit=4
    $region2: #{tpu_custom_call.1} parent=1 // loop_pre_header
      _
    $region3: #{tpu_custom_call.1} parent=1 // loop_header
      %s31 = sphi 0, %s35
      %p32 = scmp.ge.s32.totalorder %s31, 4
      %s38 = sphi 0, %s50
      %s39 = sphi 0, %s46
      %s40 = sphi 0, %s38
      %s41 = sphi 0, %s39
      %s42 = sphi 0, %s40
      %s43 = sphi 0, %s41
      %s55 = sphi 0, %s57
      %s58 = sphi 0, %s55
      %s59 = sphi 0, %s58
      %s75 = sphi 0, %s59
      %s79 = sphi 0, %s79
      %s81 = sphi 0, %s79
      %s82 = sphi 0, %s81
      %s96 = sphi 0, %s82
      %s100 = sphi 0, %s100
      %s102 = sphi 0, %s100
      %s103 = sphi 0, %s102
      %s117 = sphi 0, %s103
      %s121 = sphi 0, %s121
      %s123 = sphi 0, %s121
      %s124 = sphi 0, %s123
      %s138 = sphi 0, %s124
      %s142 = sphi 0, %s142
      %s144 = sphi 0, %s142
      %s145 = sphi 0, %s144
      %s159 = sphi 0, %s145
      %s163 = sphi 0, %s163
      %s165 = sphi 0, %s163
      %s166 = sphi 0, %s165
      %s180 = sphi 0, %s166
      %s184 = sphi 0, %s184
      %s186 = sphi 0, %s184
      %s187 = sphi 0, %s186
      %s201 = sphi 0, %s187
      %s205 = sphi 0, %s205
      %s207 = sphi 0, %s205
      %s208 = sphi 0, %s207
      %s222 = sphi 0, %s208
      %s226 = sphi 0, %s226
      %s228 = sphi 0, %s226
      %s229 = sphi 0, %s228
      %s243 = sphi 0, %s229
      %s247 = sphi 0, %s247
      %s249 = sphi 0, %s247
      %s250 = sphi 0, %s249
      %s264 = sphi 0, %s250
      %s268 = sphi 0, %s268
      %s270 = sphi 0, %s268
      %s271 = sphi 0, %s270
      %s285 = sphi 0, %s271
      %s289 = sphi 0, %s289
      %s291 = sphi 0, %s289
      %s292 = sphi 0, %s291
      %s306 = sphi 0, %s292
      %s310 = sphi 0, %s310
      %s312 = sphi 0, %s310
      %s313 = sphi 0, %s312
      %s327 = sphi 0, %s313
      %s335 = sphi 0, %s337
      %s338 = sphi 0, %s335
      %s339 = sphi 0, %s338
      %s355 = sphi 0, %s339
    $region4: #{tpu_custom_call.1} parent=1 // loop_header_branch
      %34 = sbr.rel (%p32) target = $region8
    $region5: #{tpu_custom_call.1} parent=1 // loop_body
      %s36 = ssub.s32 %s31, 1
      %s37 = ssub.s32 %s31, 2
      %s44 = sadd.s32 1, %s39
      %p45 = scmp.ge.s32.totalorder %s44, 1
      %s46 = scalar_select %p45, 0, %s44
      %s47 = sadd.s32 1, %s38
      %s48 = scalar_select %p45, %s47, %s38
      %p49 = scmp.ge.s32.totalorder %s48, 2
      %s50 = scalar_select %p49, 0, %s48
      %s51 = ssub.s32 %s38, %s50
      %s52 = ssub.s32 %s39, %s46
      %s53 = sor.u32 %s51, %s52
      %p54 = scmp.eq.s32.totalorder %s53, 0
      %s56 = sadd.s32 %s55, 1
      %s57 = scalar_select %p54, %s55, %s56
      %p60 = pneg %p54
      %p61 = scmp.eq.s32.totalorder %s31, 1
      %p62 = por %p60, %p61
      %p63 = scmp.ne.s32.totalorder %s55, %s58
      %p64 = scmp.eq.s32.totalorder %s31, 0
      %p65 = por %p63, %p64
      %p66 = scmp.ne.s32.totalorder %s55, %s58
      %p67 = scmp.eq.s32.totalorder %s36, 1
      %p68 = por %p66, %p67
      %p69 = scmp.ne.s32.totalorder %s58, %s59
      %p70 = scmp.eq.s32.totalorder %s36, 0
      %p71 = por %p69, %p70
      %p72 = scmp.ne.s32.totalorder %s58, %s59
      %p73 = scmp.eq.s32.totalorder %s37, 1
      %p74 = por %p72, %p73
      %p76 = scmp.ne.s32.totalorder %s59, %s75
      %p77 = scmp.eq.s32.totalorder %s37, 0
      %p78 = por %p76, %p77
      %s80 = sadd.s32 %s79, 1
      %p83 = scmp.eq.s32.totalorder %s31, 1
      %p84 = scmp.ne.s32.totalorder %s79, %s81
      %p85 = scmp.eq.s32.totalorder %s31, 0
      %p86 = por %p84, %p85
      %p87 = scmp.ne.s32.totalorder %s79, %s81
      %p88 = scmp.eq.s32.totalorder %s36, 1
      %p89 = por %p87, %p88
      %p90 = scmp.ne.s32.totalorder %s81, %s82
      %p91 = scmp.eq.s32.totalorder %s36, 0
      %p92 = por %p90, %p91
      %p93 = scmp.ne.s32.totalorder %s81, %s82
      %p94 = scmp.eq.s32.totalorder %s37, 1
      %p95 = por %p93, %p94
      %p97 = scmp.ne.s32.totalorder %s82, %s96
      %p98 = scmp.eq.s32.totalorder %s37, 0
      %p99 = por %p97, %p98
      %s101 = sadd.s32 %s100, 1
      %p104 = scmp.eq.s32.totalorder %s31, 1
      %p105 = scmp.ne.s32.totalorder %s100, %s102
      %p106 = scmp.eq.s32.totalorder %s31, 0
      %p107 = por %p105, %p106
      %p108 = scmp.ne.s32.totalorder %s100, %s102
      %p109 = scmp.eq.s32.totalorder %s36, 1
      %p110 = por %p108, %p109
      %p111 = scmp.ne.s32.totalorder %s102, %s103
      %p112 = scmp.eq.s32.totalorder %s36, 0
      %p113 = por %p111, %p112
      %p114 = scmp.ne.s32.totalorder %s102, %s103
      %p115 = scmp.eq.s32.totalorder %s37, 1
      %p116 = por %p114, %p115
      %p118 = scmp.ne.s32.totalorder %s103, %s117
      %p119 = scmp.eq.s32.totalorder %s37, 0
      %p120 = por %p118, %p119
      %s122 = sadd.s32 %s121, 1
      %p125 = scmp.eq.s32.totalorder %s31, 1
      %p126 = scmp.ne.s32.totalorder %s121, %s123
      %p127 = scmp.eq.s32.totalorder %s31, 0
      %p128 = por %p126, %p127
      %p129 = scmp.ne.s32.totalorder %s121, %s123
      %p130 = scmp.eq.s32.totalorder %s36, 1
      %p131 = por %p129, %p130
      %p132 = scmp.ne.s32.totalorder %s123, %s124
      %p133 = scmp.eq.s32.totalorder %s36, 0
      %p134 = por %p132, %p133
      %p135 = scmp.ne.s32.totalorder %s123, %s124
      %p136 = scmp.eq.s32.totalorder %s37, 1
      %p137 = por %p135, %p136
      %p139 = scmp.ne.s32.totalorder %s124, %s138
      %p140 = scmp.eq.s32.totalorder %s37, 0
      %p141 = por %p139, %p140
      %s143 = sadd.s32 %s142, 1
      %p146 = scmp.eq.s32.totalorder %s31, 1
      %p147 = scmp.ne.s32.totalorder %s142, %s144
      %p148 = scmp.eq.s32.totalorder %s31, 0
      %p149 = por %p147, %p148
      %p150 = scmp.ne.s32.totalorder %s142, %s144
      %p151 = scmp.eq.s32.totalorder %s36, 1
      %p152 = por %p150, %p151
      %p153 = scmp.ne.s32.totalorder %s144, %s145
      %p154 = scmp.eq.s32.totalorder %s36, 0
      %p155 = por %p153, %p154
      %p156 = scmp.ne.s32.totalorder %s144, %s145
      %p157 = scmp.eq.s32.totalorder %s37, 1
      %p158 = por %p156, %p157
      %p160 = scmp.ne.s32.totalorder %s145, %s159
      %p161 = scmp.eq.s32.totalorder %s37, 0
      %p162 = por %p160, %p161
      %s164 = sadd.s32 %s163, 1
      %p167 = scmp.eq.s32.totalorder %s31, 1
      %p168 = scmp.ne.s32.totalorder %s163, %s165
      %p169 = scmp.eq.s32.totalorder %s31, 0
      %p170 = por %p168, %p169
      %p171 = scmp.ne.s32.totalorder %s163, %s165
      %p172 = scmp.eq.s32.totalorder %s36, 1
      %p173 = por %p171, %p172
      %p174 = scmp.ne.s32.totalorder %s165, %s166
      %p175 = scmp.eq.s32.totalorder %s36, 0
      %p176 = por %p174, %p175
      %p177 = scmp.ne.s32.totalorder %s165, %s166
      %p178 = scmp.eq.s32.totalorder %s37, 1
      %p179 = por %p177, %p178
      %p181 = scmp.ne.s32.totalorder %s166, %s180
      %p182 = scmp.eq.s32.totalorder %s37, 0
      %p183 = por %p181, %p182
      %s185 = sadd.s32 %s184, 1
      %p188 = scmp.eq.s32.totalorder %s31, 1
      %p189 = scmp.ne.s32.totalorder %s184, %s186
      %p190 = scmp.eq.s32.totalorder %s31, 0
      %p191 = por %p189, %p190
      %p192 = scmp.ne.s32.totalorder %s184, %s186
      %p193 = scmp.eq.s32.totalorder %s36, 1
      %p194 = por %p192, %p193
      %p195 = scmp.ne.s32.totalorder %s186, %s187
      %p196 = scmp.eq.s32.totalorder %s36, 0
      %p197 = por %p195, %p196
      %p198 = scmp.ne.s32.totalorder %s186, %s187
      %p199 = scmp.eq.s32.totalorder %s37, 1
      %p200 = por %p198, %p199
      %p202 = scmp.ne.s32.totalorder %s187, %s201
      %p203 = scmp.eq.s32.totalorder %s37, 0
      %p204 = por %p202, %p203
      %s206 = sadd.s32 %s205, 1
      %p209 = scmp.eq.s32.totalorder %s31, 1
      %p210 = scmp.ne.s32.totalorder %s205, %s207
      %p211 = scmp.eq.s32.totalorder %s31, 0
      %p212 = por %p210, %p211
      %p213 = scmp.ne.s32.totalorder %s205, %s207
      %p214 = scmp.eq.s32.totalorder %s36, 1
      %p215 = por %p213, %p214
      %p216 = scmp.ne.s32.totalorder %s207, %s208
      %p217 = scmp.eq.s32.totalorder %s36, 0
      %p218 = por %p216, %p217
      %p219 = scmp.ne.s32.totalorder %s207, %s208
      %p220 = scmp.eq.s32.totalorder %s37, 1
      %p221 = por %p219, %p220
      %p223 = scmp.ne.s32.totalorder %s208, %s222
      %p224 = scmp.eq.s32.totalorder %s37, 0
      %p225 = por %p223, %p224
      %s227 = sadd.s32 %s226, 1
      %p230 = scmp.eq.s32.totalorder %s31, 1
      %p231 = scmp.ne.s32.totalorder %s226, %s228
      %p232 = scmp.eq.s32.totalorder %s31, 0
      %p233 = por %p231, %p232
      %p234 = scmp.ne.s32.totalorder %s226, %s228
      %p235 = scmp.eq.s32.totalorder %s36, 1
      %p236 = por %p234, %p235
      %p237 = scmp.ne.s32.totalorder %s228, %s229
      %p238 = scmp.eq.s32.totalorder %s36, 0
      %p239 = por %p237, %p238
      %p240 = scmp.ne.s32.totalorder %s228, %s229
      %p241 = scmp.eq.s32.totalorder %s37, 1
      %p242 = por %p240, %p241
      %p244 = scmp.ne.s32.totalorder %s229, %s243
      %p245 = scmp.eq.s32.totalorder %s37, 0
      %p246 = por %p244, %p245
      %s248 = sadd.s32 %s247, 1
      %p251 = scmp.eq.s32.totalorder %s31, 1
      %p252 = scmp.ne.s32.totalorder %s247, %s249
      %p253 = scmp.eq.s32.totalorder %s31, 0
      %p254 = por %p252, %p253
      %p255 = scmp.ne.s32.totalorder %s247, %s249
      %p256 = scmp.eq.s32.totalorder %s36, 1
      %p257 = por %p255, %p256
      %p258 = scmp.ne.s32.totalorder %s249, %s250
      %p259 = scmp.eq.s32.totalorder %s36, 0
      %p260 = por %p258, %p259
      %p261 = scmp.ne.s32.totalorder %s249, %s250
      %p262 = scmp.eq.s32.totalorder %s37, 1
      %p263 = por %p261, %p262
      %p265 = scmp.ne.s32.totalorder %s250, %s264
      %p266 = scmp.eq.s32.totalorder %s37, 0
      %p267 = por %p265, %p266
      %s269 = sadd.s32 %s268, 1
      %p272 = scmp.eq.s32.totalorder %s31, 1
      %p273 = scmp.ne.s32.totalorder %s268, %s270
      %p274 = scmp.eq.s32.totalorder %s31, 0
      %p275 = por %p273, %p274
      %p276 = scmp.ne.s32.totalorder %s268, %s270
      %p277 = scmp.eq.s32.totalorder %s36, 1
      %p278 = por %p276, %p277
      %p279 = scmp.ne.s32.totalorder %s270, %s271
      %p280 = scmp.eq.s32.totalorder %s36, 0
      %p281 = por %p279, %p280
      %p282 = scmp.ne.s32.totalorder %s270, %s271
      %p283 = scmp.eq.s32.totalorder %s37, 1
      %p284 = por %p282, %p283
      %p286 = scmp.ne.s32.totalorder %s271, %s285
      %p287 = scmp.eq.s32.totalorder %s37, 0
      %p288 = por %p286, %p287
      %s290 = sadd.s32 %s289, 1
      %p293 = scmp.eq.s32.totalorder %s31, 1
      %p294 = scmp.ne.s32.totalorder %s289, %s291
      %p295 = scmp.eq.s32.totalorder %s31, 0
      %p296 = por %p294, %p295
      %p297 = scmp.ne.s32.totalorder %s289, %s291
      %p298 = scmp.eq.s32.totalorder %s36, 1
      %p299 = por %p297, %p298
      %p300 = scmp.ne.s32.totalorder %s291, %s292
      %p301 = scmp.eq.s32.totalorder %s36, 0
      %p302 = por %p300, %p301
      %p303 = scmp.ne.s32.totalorder %s291, %s292
      %p304 = scmp.eq.s32.totalorder %s37, 1
      %p305 = por %p303, %p304
      %p307 = scmp.ne.s32.totalorder %s292, %s306
      %p308 = scmp.eq.s32.totalorder %s37, 0
      %p309 = por %p307, %p308
      %s311 = sadd.s32 %s310, 1
      %p314 = scmp.eq.s32.totalorder %s31, 1
      %p315 = scmp.ne.s32.totalorder %s310, %s312
      %p316 = scmp.eq.s32.totalorder %s31, 0
      %p317 = por %p315, %p316
      %p318 = scmp.ne.s32.totalorder %s310, %s312
      %p319 = scmp.eq.s32.totalorder %s36, 1
      %p320 = por %p318, %p319
      %p321 = scmp.ne.s32.totalorder %s312, %s313
      %p322 = scmp.eq.s32.totalorder %s36, 0
      %p323 = por %p321, %p322
      %p324 = scmp.ne.s32.totalorder %s312, %s313
      %p325 = scmp.eq.s32.totalorder %s37, 1
      %p326 = por %p324, %p325
      %p328 = scmp.ne.s32.totalorder %s313, %s327
      %p329 = scmp.eq.s32.totalorder %s37, 0
      %p330 = por %p328, %p329
      %s331 = ssub.s32 %s38, %s50
      %s332 = ssub.s32 %s39, %s46
      %s333 = sor.u32 %s331, %s332
      %p334 = scmp.eq.s32.totalorder %s333, 0
      %s336 = sadd.s32 %s335, 1
      %s337 = scalar_select %p334, %s335, %s336
      %p340 = pneg %p334
      %p341 = scmp.eq.s32.totalorder %s31, 1
      %p342 = por %p340, %p341
      %p343 = scmp.ne.s32.totalorder %s335, %s338
      %p344 = scmp.eq.s32.totalorder %s31, 0
      %p345 = por %p343, %p344
      %p346 = scmp.ne.s32.totalorder %s335, %s338
      %p347 = scmp.eq.s32.totalorder %s36, 1
      %p348 = por %p346, %p347
      %p349 = scmp.ne.s32.totalorder %s338, %s339
      %p350 = scmp.eq.s32.totalorder %s36, 0
      %p351 = por %p349, %p350
      %p352 = scmp.ne.s32.totalorder %s338, %s339
      %p353 = scmp.eq.s32.totalorder %s37, 1
      %p354 = por %p352, %p353
      %p356 = scmp.ne.s32.totalorder %s339, %s355
      %p357 = scmp.eq.s32.totalorder %s37, 0
      %p358 = por %p356, %p357
      %p359 = scmp.le.s32.totalorder 1, %s31
      %p360 = scmp.lt.s32.totalorder %s31, 3
      %p361 = pnand %p359, %p360
      %p362 = pneg %p361
      // Predicated region
      $region9: #{tpu_custom_call.1} parent=5 // pred_check
        _
      $region10: #{tpu_custom_call.1} parent=5 // pred_check_branch
        %364 = sbr.rel (%p361) target = $region12
      $region11: #{tpu_custom_call.1} parent=5 // pred_region
        %s365 = ssub.s32 %s31, 1
        // Predicated region
        $region13: #{tpu_custom_call.1} parent=11 // pred_check
          %p366 = pneg %p92
        $region14: #{tpu_custom_call.1} parent=11 // pred_check_branch
          %368 = sbr.rel (%p366) target = $region16
        $region15: #{tpu_custom_call.1} parent=11 // pred_region
          %s370 = ssub.s32 256, 256
          %371 = vsyncadd [#allocation13], %s370
          %s372 = sshll.u32 [#allocation12], 4
          %s373 = int_to_ptr.vmem [resolvable:$true] %s372
          %378 = dma.hbm_to_vmem [thread:$0]  %s1, 256, %s373, [#allocation13], 64, 64, 4
        $region16: #{tpu_custom_call.1} parent=11 // pred_fallthru
          _
        // Predicated region
        $region17: #{tpu_custom_call.1} parent=11 // pred_check
          %p379 = pneg %p113
        $region18: #{tpu_custom_call.1} parent=11 // pred_check_branch
          %381 = sbr.rel (%p379) target = $region20
        $region19: #{tpu_custom_call.1} parent=11 // pred_region
          %s383 = ssub.s32 16, 16
          %384 = vsyncadd [#allocation13], %s383
          %s386 = sshll.u32 [#allocation14], 4
          %s387 = int_to_ptr.vmem [resolvable:$true] %s386
          %389 = dma.hbm_to_vmem [thread:$0]  %s2, 16, %s387, [#allocation13]
        $region20: #{tpu_custom_call.1} parent=11 // pred_fallthru
          _
        // Predicated region
        $region21: #{tpu_custom_call.1} parent=11 // pred_check
          %p390 = pneg %p134
        $region22: #{tpu_custom_call.1} parent=11 // pred_check_branch
          %392 = sbr.rel (%p390) target = $region24
        $region23: #{tpu_custom_call.1} parent=11 // pred_region
          %s394 = ssub.s32 64, 64
          %395 = vsyncadd [#allocation16], %s394
          %s397 = sshll.u32 [#allocation15], 4
          %s398 = int_to_ptr.vmem [resolvable:$true] %s397
          %400 = dma.hbm_to_vmem [thread:$0]  %s3, 64, %s398, [#allocation16]
        $region24: #{tpu_custom_call.1} parent=11 // pred_fallthru
          _
        // Predicated region
        $region25: #{tpu_custom_call.1} parent=11 // pred_check
          %p401 = pneg %p155
        $region26: #{tpu_custom_call.1} parent=11 // pred_check_branch
          %403 = sbr.rel (%p401) target = $region28
        $region27: #{tpu_custom_call.1} parent=11 // pred_region
          %s405 = ssub.s32 16, 16
          %406 = vsyncadd [#allocation16], %s405
          %s408 = sshll.u32 [#allocation17], 4
          %s409 = int_to_ptr.vmem [resolvable:$true] %s408
          %411 = dma.hbm_to_vmem [thread:$0]  %s4, 16, %s409, [#allocation16]
        $region28: #{tpu_custom_call.1} parent=11 // pred_fallthru
          _
        // Predicated region
        $region29: #{tpu_custom_call.1} parent=11 // pred_check
          %p412 = pneg %p176
        $region30: #{tpu_custom_call.1} parent=11 // pred_check_branch
          %414 = sbr.rel (%p412) target = $region32
        $region31: #{tpu_custom_call.1} parent=11 // pred_region
          %s416 = ssub.s32 256, 256
          %417 = vsyncadd [#allocation19], %s416
          %s418 = sshll.u32 [#allocation18], 4
          %s419 = int_to_ptr.vmem [resolvable:$true] %s418
          %424 = dma.hbm_to_vmem [thread:$0]  %s5, 256, %s419, [#allocation19], 64, 64, 4
        $region32: #{tpu_custom_call.1} parent=11 // pred_fallthru
          _
        // Predicated region
        $region33: #{tpu_custom_call.1} parent=11 // pred_check
          %p425 = pneg %p197
        $region34: #{tpu_custom_call.1} parent=11 // pred_check_branch
          %427 = sbr.rel (%p425) target = $region36
        $region35: #{tpu_custom_call.1} parent=11 // pred_region
          %s429 = ssub.s32 16, 16
          %430 = vsyncadd [#allocation19], %s429
          %s432 = sshll.u32 [#allocation20], 4
          %s433 = int_to_ptr.vmem [resolvable:$true] %s432
          %435 = dma.hbm_to_vmem [thread:$0]  %s6, 16, %s433, [#allocation19]
        $region36: #{tpu_custom_call.1} parent=11 // pred_fallthru
          _
        // Predicated region
        $region37: #{tpu_custom_call.1} parent=11 // pred_check
          %p436 = pneg %p218
        $region38: #{tpu_custom_call.1} parent=11 // pred_check_branch
          %438 = sbr.rel (%p436) target = $region40
        $region39: #{tpu_custom_call.1} parent=11 // pred_region
          %s440 = ssub.s32 64, 64
          %441 = vsyncadd [#allocation22], %s440
          %s443 = sshll.u32 [#allocation21], 4
          %s444 = int_to_ptr.vmem [resolvable:$true] %s443
          %446 = dma.hbm_to_vmem [thread:$0]  %s7, 64, %s444, [#allocation22]
        $region40: #{tpu_custom_call.1} parent=11 // pred_fallthru
          _
        // Predicated region
        $region41: #{tpu_custom_call.1} parent=11 // pred_check
          %p447 = pneg %p239
        $region42: #{tpu_custom_call.1} parent=11 // pred_check_branch
          %449 = sbr.rel (%p447) target = $region44
        $region43: #{tpu_custom_call.1} parent=11 // pred_region
          %s451 = ssub.s32 16, 16
          %452 = vsyncadd [#allocation22], %s451
          %s454 = sshll.u32 [#allocation23], 4
          %s455 = int_to_ptr.vmem [resolvable:$true] %s454
          %457 = dma.hbm_to_vmem [thread:$0]  %s8, 16, %s455, [#allocation22]
        $region44: #{tpu_custom_call.1} parent=11 // pred_fallthru
          _
        // Predicated region
        $region45: #{tpu_custom_call.1} parent=11 // pred_check
          %p458 = pneg %p260
        $region46: #{tpu_custom_call.1} parent=11 // pred_check_branch
          %460 = sbr.rel (%p458) target = $region48
        $region47: #{tpu_custom_call.1} parent=11 // pred_region
          %s462 = ssub.s32 256, 256
          %463 = vsyncadd [#allocation25], %s462
          %s464 = sshll.u32 [#allocation24], 4
          %s465 = int_to_ptr.vmem [resolvable:$true] %s464
          %470 = dma.hbm_to_vmem [thread:$0]  %s9, 256, %s465, [#allocation25], 64, 64, 4
        $region48: #{tpu_custom_call.1} parent=11 // pred_fallthru
          _
        // Predicated region
        $region49: #{tpu_custom_call.1} parent=11 // pred_check
          %p471 = pneg %p281
        $region50: #{tpu_custom_call.1} parent=11 // pred_check_branch
          %473 = sbr.rel (%p471) target = $region52
        $region51: #{tpu_custom_call.1} parent=11 // pred_region
          %s475 = ssub.s32 16, 16
          %476 = vsyncadd [#allocation25], %s475
          %s478 = sshll.u32 [#allocation26], 4
          %s479 = int_to_ptr.vmem [resolvable:$true] %s478
          %481 = dma.hbm_to_vmem [thread:$0]  %s10, 16, %s479, [#allocation25]
        $region52: #{tpu_custom_call.1} parent=11 // pred_fallthru
          _
        // Predicated region
        $region53: #{tpu_custom_call.1} parent=11 // pred_check
          %p482 = pneg %p302
        $region54: #{tpu_custom_call.1} parent=11 // pred_check_branch
          %484 = sbr.rel (%p482) target = $region56
        $region55: #{tpu_custom_call.1} parent=11 // pred_region
          %s486 = ssub.s32 128, 128
          %487 = vsyncadd [#allocation28], %s486
          %s489 = sshll.u32 [#allocation27], 4
          %s490 = int_to_ptr.vmem [resolvable:$true] %s489
          %492 = dma.hbm_to_vmem [thread:$0]  %s11, 128, %s490, [#allocation28]
        $region56: #{tpu_custom_call.1} parent=11 // pred_fallthru
          _
        // Predicated region
        $region57: #{tpu_custom_call.1} parent=11 // pred_check
          %p493 = pneg %p323
        $region58: #{tpu_custom_call.1} parent=11 // pred_check_branch
          %495 = sbr.rel (%p493) target = $region60
        $region59: #{tpu_custom_call.1} parent=11 // pred_region
          %s497 = ssub.s32 16, 16
          %498 = vsyncadd [#allocation28], %s497
          %s500 = sshll.u32 [#allocation29], 4
          %s501 = int_to_ptr.vmem [resolvable:$true] %s500
          %503 = dma.hbm_to_vmem [thread:$0]  %s12, 16, %s501, [#allocation28]
        $region60: #{tpu_custom_call.1} parent=11 // pred_fallthru
          _
      $region12: #{tpu_custom_call.1} parent=5 // pred_fallthru
        _
      %p504 = scmp.lt.s32.totalorder %s31, 2
      // Predicated region
      $region61: #{tpu_custom_call.1} parent=5 // pred_check
        %p505 = pneg %p504
      $region62: #{tpu_custom_call.1} parent=5 // pred_check_branch
        %507 = sbr.rel (%p505) target = $region64
      $region63: #{tpu_custom_call.1} parent=5 // pred_region
        // Predicated region
        $region65: #{tpu_custom_call.1} parent=63 // pred_check
          %p508 = pneg %p65
        $region66: #{tpu_custom_call.1} parent=63 // pred_check_branch
          %510 = sbr.rel (%p508) target = $region68
        $region67: #{tpu_custom_call.1} parent=63 // pred_region
          %s511 = sand.u32 %s55, 1
          %s512 = scalar_lea.sflag [#allocation10], %s511
          %s513 = sand.u32 %s55, 1
          %s514 = smul.addr %s513, 4
          %s515 = scalar_lea.vmem [#allocation9], %s514
          %s517 = ssub.s32 64, 64
          %518 = vsyncadd %s512, %s517
          %s519 = sadd.s32 %s39, %s38
          %s520 = smul.addr %s519, 64
          %s521 = scalar_lea.hbm %s0, %s520
          %s523 = sshll.u32 %s515, 4
          %s524 = int_to_ptr.vmem [resolvable:$true] %s523
          %526 = dma.hbm_to_vmem [thread:$0]  %s521, 64, %s524, %s512
        $region68: #{tpu_custom_call.1} parent=63 // pred_fallthru
          _
      $region64: #{tpu_custom_call.1} parent=5 // pred_fallthru
        _
      %p527 = scmp.le.s32.totalorder 1, %s31
      %p528 = scmp.lt.s32.totalorder %s31, 3
      %p529 = pnand %p527, %p528
      %p530 = pneg %p529
      // Predicated region
      $region69: #{tpu_custom_call.1} parent=5 // pred_check
        _
      $region70: #{tpu_custom_call.1} parent=5 // pred_check_branch
        %532 = sbr.rel (%p529) target = $region72
      $region71: #{tpu_custom_call.1} parent=5 // pred_region
        %s533 = ssub.s32 %s31, 1
        %s534 = sand.u32 %s58, 1
        %s535 = scalar_lea.sflag [#allocation10], %s534
        %s536 = sand.u32 %s58, 1
        %s537 = smul.addr %s536, 4
        %s538 = scalar_lea.vmem [#allocation9], %s537
        // Predicated region
        $region73: #{tpu_custom_call.1} parent=71 // pred_check
          %p539 = pneg %p71
        $region74: #{tpu_custom_call.1} parent=71 // pred_check_branch
          %541 = sbr.rel (%p539) target = $region76
        $region75: #{tpu_custom_call.1} parent=71 // pred_region
          %542 = dma.done %s535, 64
        $region76: #{tpu_custom_call.1} parent=71 // pred_fallthru
          _
        // Predicated region
        $region77: #{tpu_custom_call.1} parent=71 // pred_check
          %p543 = pneg %p92
        $region78: #{tpu_custom_call.1} parent=71 // pred_check_branch
          %545 = sbr.rel (%p543) target = $region80
        $region79: #{tpu_custom_call.1} parent=71 // pred_region
          %546 = dma.done [#allocation13], 256
        $region80: #{tpu_custom_call.1} parent=71 // pred_fallthru
          _
        // Predicated region
        $region81: #{tpu_custom_call.1} parent=71 // pred_check
          %p547 = pneg %p113
        $region82: #{tpu_custom_call.1} parent=71 // pred_check_branch
          %549 = sbr.rel (%p547) target = $region84
        $region83: #{tpu_custom_call.1} parent=71 // pred_region
          %550 = dma.done [#allocation13], 16
        $region84: #{tpu_custom_call.1} parent=71 // pred_fallthru
          _
        // Predicated region
        $region85: #{tpu_custom_call.1} parent=71 // pred_check
          %p551 = pneg %p134
        $region86: #{tpu_custom_call.1} parent=71 // pred_check_branch
          %553 = sbr.rel (%p551) target = $region88
        $region87: #{tpu_custom_call.1} parent=71 // pred_region
          %554 = dma.done [#allocation16], 64
        $region88: #{tpu_custom_call.1} parent=71 // pred_fallthru
          _
        // Predicated region
        $region89: #{tpu_custom_call.1} parent=71 // pred_check
          %p555 = pneg %p155
        $region90: #{tpu_custom_call.1} parent=71 // pred_check_branch
          %557 = sbr.rel (%p555) target = $region92
        $region91: #{tpu_custom_call.1} parent=71 // pred_region
          %558 = dma.done [#allocation16], 16
        $region92: #{tpu_custom_call.1} parent=71 // pred_fallthru
          _
        // Predicated region
        $region93: #{tpu_custom_call.1} parent=71 // pred_check
          %p559 = pneg %p176
        $region94: #{tpu_custom_call.1} parent=71 // pred_check_branch
          %561 = sbr.rel (%p559) target = $region96
        $region95: #{tpu_custom_call.1} parent=71 // pred_region
          %562 = dma.done [#allocation19], 256
        $region96: #{tpu_custom_call.1} parent=71 // pred_fallthru
          _
        // Predicated region
        $region97: #{tpu_custom_call.1} parent=71 // pred_check
          %p563 = pneg %p197
        $region98: #{tpu_custom_call.1} parent=71 // pred_check_branch
          %565 = sbr.rel (%p563) target = $region100
        $region99: #{tpu_custom_call.1} parent=71 // pred_region
          %566 = dma.done [#allocation19], 16
        $region100: #{tpu_custom_call.1} parent=71 // pred_fallthru
          _
        // Predicated region
        $region101: #{tpu_custom_call.1} parent=71 // pred_check
          %p567 = pneg %p218
        $region102: #{tpu_custom_call.1} parent=71 // pred_check_branch
          %569 = sbr.rel (%p567) target = $region104
        $region103: #{tpu_custom_call.1} parent=71 // pred_region
          %570 = dma.done [#allocation22], 64
        $region104: #{tpu_custom_call.1} parent=71 // pred_fallthru
          _
        // Predicated region
        $region105: #{tpu_custom_call.1} parent=71 // pred_check
          %p571 = pneg %p239
        $region106: #{tpu_custom_call.1} parent=71 // pred_check_branch
          %573 = sbr.rel (%p571) target = $region108
        $region107: #{tpu_custom_call.1} parent=71 // pred_region
          %574 = dma.done [#allocation22], 16
        $region108: #{tpu_custom_call.1} parent=71 // pred_fallthru
          _
        // Predicated region
        $region109: #{tpu_custom_call.1} parent=71 // pred_check
          %p575 = pneg %p260
        $region110: #{tpu_custom_call.1} parent=71 // pred_check_branch
          %577 = sbr.rel (%p575) target = $region112
        $region111: #{tpu_custom_call.1} parent=71 // pred_region
          %578 = dma.done [#allocation25], 256
        $region112: #{tpu_custom_call.1} parent=71 // pred_fallthru
          _
        // Predicated region
        $region113: #{tpu_custom_call.1} parent=71 // pred_check
          %p579 = pneg %p281
        $region114: #{tpu_custom_call.1} parent=71 // pred_check_branch
          %581 = sbr.rel (%p579) target = $region116
        $region115: #{tpu_custom_call.1} parent=71 // pred_region
          %582 = dma.done [#allocation25], 16
        $region116: #{tpu_custom_call.1} parent=71 // pred_fallthru
          _
        // Predicated region
        $region117: #{tpu_custom_call.1} parent=71 // pred_check
          %p583 = pneg %p302
        $region118: #{tpu_custom_call.1} parent=71 // pred_check_branch
          %585 = sbr.rel (%p583) target = $region120
        $region119: #{tpu_custom_call.1} parent=71 // pred_region
          %586 = dma.done [#allocation28], 128
        $region120: #{tpu_custom_call.1} parent=71 // pred_fallthru
          _
        // Predicated region
        $region121: #{tpu_custom_call.1} parent=71 // pred_check
          %p587 = pneg %p323
        $region122: #{tpu_custom_call.1} parent=71 // pred_check_branch
          %589 = sbr.rel (%p587) target = $region124
        $region123: #{tpu_custom_call.1} parent=71 // pred_region
          %590 = dma.done [#allocation28], 16
        $region124: #{tpu_custom_call.1} parent=71 // pred_fallthru
          _
        %s591 = sand.u32 %s58, 1
        %s592 = scalar_lea.sflag [#allocation10], %s591
        %s593 = sand.u32 %s58, 1
        %s594 = smul.addr %s593, 4
        %s595 = scalar_lea.vmem [#allocation9], %s594
        %p596 = pneg %p71
        %p597 = pneg %p68
        %p598 = pneg %p92
        %p599 = pneg %p89
        %p600 = pneg %p113
        %p601 = pneg %p110
        %p602 = pneg %p134
        %p603 = pneg %p131
        %p604 = pneg %p155
        %p605 = pneg %p152
        %p606 = pneg %p176
        %p607 = pneg %p173
        %p608 = pneg %p197
        %p609 = pneg %p194
        %p610 = pneg %p218
        %p611 = pneg %p215
        %p612 = pneg %p239
        %p613 = pneg %p236
        %p614 = pneg %p260
        %p615 = pneg %p257
        %p616 = pneg %p281
        %p617 = pneg %p278
        %p618 = pneg %p302
        %p619 = pneg %p299
        %p620 = pneg %p323
        %p621 = pneg %p320
        %p622 = pneg %p351
        %p623 = pneg %p348
        %s624 = sand.u32 %s338, 1
        %s625 = scalar_lea.sflag [#allocation11], %s624
        %s626 = sand.u32 %s338, 1
        %s627 = smul.addr %s626, 8
        %s628 = scalar_lea.vmem [#allocation30], %s627
        %p630 = scmp.eq.s32.totalorder %s41, 0
        // Predicated region
        $region125: #{tpu_custom_call.1} parent=71 // pred_check
          %p631 = pneg %p630
        $region126: #{tpu_custom_call.1} parent=71 // pred_check_branch
          %633 = sbr.rel (%p631) target = $region128
        $region127: #{tpu_custom_call.1} parent=71 // pred_region
          %vm634 = vcmask 261120
          %635 = vst.msk [vmem:[#allocation2] sm:$0xff] %vm634, 0.0
          %vm636 = vcmask 256000
          %637 = vst.msk [vmem:[#allocation3] sm:$0x7] %vm636, 0.0
        $region128: #{tpu_custom_call.1} parent=71 // pred_fallthru
          _
        %v638 = vld [vmem:[%s538] sm:$0xf]
        %v639 = vld [vmem:[#allocation12] sm:$0xf]
        %v640 = vld [vmem:[#allocation12 + $0x4] sm:$0xf]
        %v641 = vld [vmem:[#allocation12 + $0x8] sm:$0xf]
        %v642 = vld [vmem:[#allocation12 + $0xc] sm:$0xf]
        %v643 = vld [vmem:[#allocation14] sm:$0x1]
        %v645 = vlaneseq
        %v646 = vshrl.u32 %v645, 7
        %v647 = vsub.s32 0, %v646
        %v648 = vrot.slane %v643, %v647
        %v654 = vunpack.c.l.b16 %v639
        %v655 = vunpack.c.l.b16 %v640
        %v656 = vunpack.c.l.b16 %v641
        %v657 = vunpack.c.l.b16 %v642
        %v658 = vpack.c.b16 %v655, %v654
        %v659 = vpack.c.b16 %v657, %v656
        %vm662 = vcmask 261120
        %v664 = vsel %vm662, %v638, 0
        %666 = vmatprep.subr.bf16.mxu0 0
        %667 = vmatpush1.bf16.msra.mxu0 %v658
        %668 = vmatprep.subr.bf16.mxu0 0
        %669 = vmatpush1.bf16.msra.mxu0 %v659
        %670 = vmatprep.subr.bf16.mxu0 0
        %671 = vmatpush1.bf16.msra.mxu0 0
        %672 = vmatprep.subr.bf16.mxu0 0
        %673 = vmatpush1.bf16.msra.mxu0 0
        %674 = vmatprep.subr.bf16.mxu0 0
        %675 = vmatpush1.bf16.msra.mxu0 0
        %676 = vmatprep.subr.bf16.mxu0 0
        %677 = vmatpush1.bf16.msra.mxu0 0
        %678 = vmatprep.subr.bf16.mxu0 0
        %679 = vmatpush1.bf16.msra.mxu0 0
        %680 = vmatprep.subr.bf16.mxu0 0
        %681 = vmatpush1.bf16.msra.mxu0 0
        %682 = vmatprep.subr.bf16.mxu0 0
        %683 = vmatpush1.bf16.msra.mxu0 0
        %684 = vmatprep.subr.bf16.mxu0 0
        %685 = vmatpush1.bf16.msra.mxu0 0
        %686 = vmatprep.subr.bf16.mxu0 0
        %687 = vmatpush1.bf16.msra.mxu0 0
        %688 = vmatprep.subr.bf16.mxu0 0
        %689 = vmatpush1.bf16.msra.mxu0 0
        %690 = vmatprep.subr.bf16.mxu0 0
        %691 = vmatpush1.bf16.msra.mxu0 0
        %692 = vmatprep.subr.bf16.mxu0 0
        %693 = vmatpush1.bf16.msra.mxu0 0
        %694 = vmatprep.subr.bf16.mxu0 0
        %695 = vmatpush1.bf16.msra.mxu0 0
        %696 = vmatprep.subr.bf16.mxu0 0
        %697 = vmatpush1.bf16.msra.mxu0 0
        %698 = vmatprep.mubr.bf16.mxu0 0
        %699 = vmatmul.mubr.bf16.gmra.mrb[0].mxu0 %v664
        %v700 = vpop.f32.mrb[0].mxu0
        %v701 = vadd.f32 %v648, %v700
        %v702 = vpop.f32.mrb[0].mxu0
        %v703 = vpop.f32.mrb[0].mxu0
        %v704 = vpop.f32.mrb[0].mxu0
        %705 = vdwg.mxu0
        %v706 = vld [vmem:[#allocation3] sm:$0x7]
        %v708 = vrot.slane %v701, 5
        %vm710 = vcmask 1042432
        %v711 = vsel %vm710, %v706, %v708
        %vm712 = vcmask 261125
        %713 = vst.msk [vmem:[#allocation3 - $0x5] sm:$0xe0] %vm712, %v701
        %v714 = vld [vmem:[#allocation15] sm:$0xf]
        %v715 = vlaneseq
        %v716 = vshrl.u32 %v715, 7
        %v717 = vsub.s32 0, %v716
        %v718 = vrot.slane %v714, %v717
        %v719 = vmul.f32 %v711, %v718
        %v720 = vlaneseq
        %v721 = vshrl.u32 %v720, 7
        %v722 = vsub.s32 1, %v721
        %v723 = vrot.slane %v714, %v722
        %v724 = vmul.f32 %v711, %v723
        %v725 = vmul.f32 %v708, %v723
        %vm728 = vcmask 1046528
        %v729 = vrot.slane %v724, 1
        %v730 = vrot.slane %v725, 1
        %v731 = vsel %vm728, %v729, %v730
        %v733 = vadd.f32 %v719, %v731
        %v734 = vlaneseq
        %v735 = vshrl.u32 %v734, 7
        %v736 = vsub.s32 2, %v735
        %v737 = vrot.slane %v714, %v736
        %v738 = vmul.f32 %v711, %v737
        %v739 = vmul.f32 %v708, %v737
        %vm742 = vcmask 1045504
        %v743 = vrot.slane %v738, 2
        %v744 = vrot.slane %v739, 2
        %v745 = vsel %vm742, %v743, %v744
        %v747 = vadd.f32 %v733, %v745
        %v748 = vlaneseq
        %v749 = vshrl.u32 %v748, 7
        %v750 = vsub.s32 3, %v749
        %v751 = vrot.slane %v714, %v750
        %v752 = vmul.f32 %v711, %v751
        %v753 = vmul.f32 %v708, %v751
        %vm756 = vcmask 1044480
        %v757 = vrot.slane %v752, 3
        %v758 = vrot.slane %v753, 3
        %v759 = vsel %vm756, %v757, %v758
        %v761 = vadd.f32 %v747, %v759
        %v762 = vld [vmem:[#allocation17] sm:$0x1]
        %v764 = vlaneseq
        %v765 = vshrl.u32 %v764, 7
        %v766 = vsub.s32 0, %v765
        %v767 = vrot.slane %v762, %v766
        %v769 = vadd.f32 %v761, %v767
        %v770 = vxor.u32 %v769, 2147483648
        %v771 = vmul.f32 %v770, 1.442695
        %v772 = vpow.pop %v771
        %v773 = vadd.f32 %v772, 1.0
        %v774 = vrcp.pop %v773
        %v775 = vmul.f32 1.0, %v774
        %v776 = vmul.f32 %v769, %v775
        %v777 = vpack.c.bf16 %v776, %v776
        %v778 = vld [vmem:[#allocation18] sm:$0xf]
        %v779 = vld [vmem:[#allocation18 + $0x4] sm:$0xf]
        %v780 = vld [vmem:[#allocation18 + $0x8] sm:$0xf]
        %v781 = vld [vmem:[#allocation18 + $0xc] sm:$0xf]
        %v782 = vld [vmem:[#allocation20] sm:$0x1]
        %v784 = vlaneseq
        %v785 = vshrl.u32 %v784, 7
        %v786 = vsub.s32 0, %v785
        %v787 = vrot.slane %v782, %v786
        %v793 = vunpack.c.l.b16 %v778
        %v794 = vunpack.c.l.b16 %v779
        %v795 = vunpack.c.l.b16 %v780
        %v796 = vunpack.c.l.b16 %v781
        %v797 = vpack.c.b16 %v794, %v793
        %v798 = vpack.c.b16 %v796, %v795
        %v802 = vsel %vm662, %v777, 0
        %804 = vmatprep.subr.bf16.mxu0 0
        %805 = vmatpush1.bf16.msra.mxu0 %v797
        %806 = vmatprep.subr.bf16.mxu0 0
        %807 = vmatpush1.bf16.msra.mxu0 %v798
        %808 = vmatprep.subr.bf16.mxu0 0
        %809 = vmatpush1.bf16.msra.mxu0 0
        %810 = vmatprep.subr.bf16.mxu0 0
        %811 = vmatpush1.bf16.msra.mxu0 0
        %812 = vmatprep.subr.bf16.mxu0 0
        %813 = vmatpush1.bf16.msra.mxu0 0
        %814 = vmatprep.subr.bf16.mxu0 0
        %815 = vmatpush1.bf16.msra.mxu0 0
        %816 = vmatprep.subr.bf16.mxu0 0
        %817 = vmatpush1.bf16.msra.mxu0 0
        %818 = vmatprep.subr.bf16.mxu0 0
        %819 = vmatpush1.bf16.msra.mxu0 0
        %820 = vmatprep.subr.bf16.mxu0 0
        %821 = vmatpush1.bf16.msra.mxu0 0
        %822 = vmatprep.subr.bf16.mxu0 0
        %823 = vmatpush1.bf16.msra.mxu0 0
        %824 = vmatprep.subr.bf16.mxu0 0
        %825 = vmatpush1.bf16.msra.mxu0 0
        %826 = vmatprep.subr.bf16.mxu0 0
        %827 = vmatpush1.bf16.msra.mxu0 0
        %828 = vmatprep.subr.bf16.mxu0 0
        %829 = vmatpush1.bf16.msra.mxu0 0
        %830 = vmatprep.subr.bf16.mxu0 0
        %831 = vmatpush1.bf16.msra.mxu0 0
        %832 = vmatprep.subr.bf16.mxu0 0
        %833 = vmatpush1.bf16.msra.mxu0 0
        %834 = vmatprep.subr.bf16.mxu0 0
        %835 = vmatpush1.bf16.msra.mxu0 0
        %836 = vmatprep.mubr.bf16.mxu0 0
        %837 = vmatmul.mubr.bf16.gmra.mrb[0].mxu0 %v802
        %v838 = vpop.f32.mrb[0].mxu0
        %v839 = vadd.f32 %v787, %v838
        %v840 = vpop.f32.mrb[0].mxu0
        %v841 = vpop.f32.mrb[0].mxu0
        %v842 = vpop.f32.mrb[0].mxu0
        %843 = vdwg.mxu0
        %v844 = vpack.c.bf16 %v839, %v839
        %v845 = vld [vmem:[#allocation21] sm:$0xf]
        %v846 = vld [vmem:[#allocation23] sm:$0x1]
        %v848 = vlaneseq
        %v849 = vshrl.u32 %v848, 7
        %v850 = vsub.s32 0, %v849
        %v851 = vrot.slane %v846, %v850
        %vm853 = vcmask 64512
        %v855 = vsel %vm853, %v844, 0
        %vm857 = vcmask 1043456
        %v859 = vsel %vm857, %v845, 0
        %861 = vmatprep.subr.bf16.mxu0 0
        %862 = vmatpush1.bf16.msra.mxu0 %v859
        %863 = vmatprep.subr.bf16.mxu0 0
        %864 = vmatpush1.bf16.msra.mxu0 0
        %865 = vmatprep.subr.bf16.mxu0 0
        %866 = vmatpush1.bf16.msra.mxu0 0
        %867 = vmatprep.subr.bf16.mxu0 0
        %868 = vmatpush1.bf16.msra.mxu0 0
        %869 = vmatprep.subr.bf16.mxu0 0
        %870 = vmatpush1.bf16.msra.mxu0 0
        %871 = vmatprep.subr.bf16.mxu0 0
        %872 = vmatpush1.bf16.msra.mxu0 0
        %873 = vmatprep.subr.bf16.mxu0 0
        %874 = vmatpush1.bf16.msra.mxu0 0
        %875 = vmatprep.subr.bf16.mxu0 0
        %876 = vmatpush1.bf16.msra.mxu0 0
        %877 = vmatprep.subr.bf16.mxu0 0
        %878 = vmatpush1.bf16.msra.mxu0 0
        %879 = vmatprep.subr.bf16.mxu0 0
        %880 = vmatpush1.bf16.msra.mxu0 0
        %881 = vmatprep.subr.bf16.mxu0 0
        %882 = vmatpush1.bf16.msra.mxu0 0
        %883 = vmatprep.subr.bf16.mxu0 0
        %884 = vmatpush1.bf16.msra.mxu0 0
        %885 = vmatprep.subr.bf16.mxu0 0
        %886 = vmatpush1.bf16.msra.mxu0 0
        %887 = vmatprep.subr.bf16.mxu0 0
        %888 = vmatpush1.bf16.msra.mxu0 0
        %889 = vmatprep.subr.bf16.mxu0 0
        %890 = vmatpush1.bf16.msra.mxu0 0
        %891 = vmatprep.subr.bf16.mxu0 0
        %892 = vmatpush1.bf16.msra.mxu0 0
        %893 = vmatprep.mubr.bf16.mxu0 0
        %894 = vmatmul.mubr.bf16.gmra.mrb[0].mxu0 %v855
        %v895 = vpop.f32.mrb[0].mxu0
        %v896 = vadd.f32 %v851, %v895
        %v897 = vpop.f32.mrb[0].mxu0
        %v898 = vpop.f32.mrb[0].mxu0
        %v899 = vpop.f32.mrb[0].mxu0
        %900 = vdwg.mxu0
        %vm901 = vcmp.gt.f32.partialorder %v896, 20.0
        %v902 = vmin.f32 %v896, 20.0
        %v903 = vmul.f32 %v902, 1.442695
        %v904 = vpow.pop %v903
        %v905 = vadd.f32 %v904, 1.0
        %v906 = vlog2.pop %v905
        %v907 = vmul.f32 %v906, 0.6931472
        %v908 = vmul.f32 -0.5, %v904
        %v909 = vadd.f32 %v908, 1.0
        %v910 = vmul.f32 %v909, %v904
        %v911 = vand.u32 2147483647, %v904
        %vm912 = vcmp.lt.f32.partialorder %v911, 0.0004427343
        %v913 = vsel %vm912, %v910, %v907
        %v914 = vsel %vm901, %v896, %v913
        %915 = vst.msk [vmem:[#allocation4] sm:$0xff] %vm662, %v914
        %916 = vst.msk [vmem:[#allocation5] sm:$0xff] %vm662, %v776
        %918 = vrot.lane.b32.xlu0 %v839, 120
        %v919 = vpop.permute.xlu0 %918
        %921 = vst.msk [vmem:[#allocation6] sm:$0xff] %vm853, %v919
        %922 = vrot.lane.b32.xlu0 %v839, 112
        %v923 = vpop.permute.xlu0 %922
        %925 = vst.msk [vmem:[#allocation7] sm:$0xff] %vm853, %v923
        %v926 = vld [vmem:[#allocation27] sm:$0xff]
        %v927 = vlaneseq
        %v928 = vshrl.u32 %v927, 7
        %v929 = vlaneseq
        %v930 = vand.u32 %v929, 127
        %vm931 = vcmp.eq.s32.totalorder %v928, %v930
        %v932 = vsel %vm931, 1, 0
        %v933 = vcvt.s32.f32 %v932
        %v934 = vld [vmem:[#allocation2] sm:$0xff]
        %v935 = vld [vmem:[#allocation4] sm:$0xff]
        %v936 = vld [vmem:[#allocation5] sm:$0xff]
        %v937 = vmul.f32 %v935, %v936
        %v938 = vld [vmem:[#allocation6] sm:$0xff]
        %v939 = vld [vmem:[#allocation7] sm:$0xff]
        %v940 = vlaneseq
        %v941 = vshrl.u32 %v940, 7
        %v942 = vsub.s32 0, %v941
        %v943 = vrot.slane %v938, %v942
        %v944 = vmul.f32 %v943, %v933
        %v945 = vsel %vm853, %v944, 0.0
        %946 = vadd.xlane.f32.xlu0 %v945
        %v947 = vpop.xlane.xlu0 %946
        %v948 = vlaneseq
        %v949 = vshrl.u32 %v948, 7
        %v950 = vsub.s32 0, %v949
        %v951 = vrot.slane %v939, %v950
        %v952 = vmul.f32 %v951, %v933
        %v953 = vsel %vm853, %v952, 0.0
        %954 = vadd.xlane.f32.xlu0 %v953
        %v955 = vpop.xlane.xlu0 %954
        %v956 = vlaneseq
        %v957 = vshrl.u32 %v956, 7
        %v958 = vsub.s32 0, %v957
        %v959 = vrot.slane %v935, %v958
        %v960 = vmul.f32 %v959, %v926
        %v961 = vmul.f32 %v960, 1.442695
        %v962 = vpow.pop %v961
        %v963 = vmul.f32 %v962, %v934
        %v964 = vlaneseq
        %v965 = vshrl.u32 %v964, 7
        %v966 = vsub.s32 0, %v965
        %v967 = vrot.slane %v937, %v966
        %v968 = vmul.f32 %v947, %v967
        %v969 = vadd.f32 %v963, %v968
        %v970 = vmul.f32 %v969, %v955
        %v971 = vsel %vm662, %v970, 0.0
        %v972 = vrot.slane %v971, 4
        %v973 = vadd.f32 %v971, %v972
        %v974 = vrot.slane %v973, 2
        %v975 = vadd.f32 %v973, %v974
        %v976 = vrot.slane %v975, 1
        %v977 = vadd.f32 %v975, %v976
        %v978 = vlaneseq
        %v979 = vshrl.u32 %v978, 7
        %v980 = vsub.s32 1, %v979
        %v981 = vrot.slane %v938, %v980
        %v982 = vmul.f32 %v981, %v933
        %v983 = vsel %vm853, %v982, 0.0
        %984 = vadd.xlane.f32.xlu0 %v983
        %v985 = vpop.xlane.xlu0 %984
        %v986 = vlaneseq
        %v987 = vshrl.u32 %v986, 7
        %v988 = vsub.s32 1, %v987
        %v989 = vrot.slane %v939, %v988
        %v990 = vmul.f32 %v989, %v933
        %v991 = vsel %vm853, %v990, 0.0
        %992 = vadd.xlane.f32.xlu0 %v991
        %v993 = vpop.xlane.xlu0 %992
        %v994 = vlaneseq
        %v995 = vshrl.u32 %v994, 7
        %v996 = vsub.s32 1, %v995
        %v997 = vrot.slane %v935, %v996
        %v998 = vmul.f32 %v997, %v926
        %v999 = vmul.f32 %v998, 1.442695
        %v1000 = vpow.pop %v999
        %v1001 = vmul.f32 %v1000, %v969
        %v1002 = vlaneseq
        %v1003 = vshrl.u32 %v1002, 7
        %v1004 = vsub.s32 1, %v1003
        %v1005 = vrot.slane %v937, %v1004
        %v1006 = vmul.f32 %v985, %v1005
        %v1007 = vadd.f32 %v1001, %v1006
        %v1008 = vmul.f32 %v1007, %v993
        %v1009 = vsel %vm662, %v1008, 0.0
        %v1010 = vrot.slane %v1009, 4
        %v1011 = vadd.f32 %v1009, %v1010
        %v1012 = vrot.slane %v1011, 2
        %v1013 = vadd.f32 %v1011, %v1012
        %v1014 = vrot.slane %v1013, 1
        %v1015 = vadd.f32 %v1013, %v1014
        %v1016 = vlaneseq
        %v1017 = vshrl.u32 %v1016, 7
        %v1018 = vsub.s32 2, %v1017
        %v1019 = vrot.slane %v938, %v1018
        %v1020 = vmul.f32 %v1019, %v933
        %v1021 = vsel %vm853, %v1020, 0.0
        %1022 = vadd.xlane.f32.xlu0 %v1021
        %v1023 = vpop.xlane.xlu0 %1022
        %v1024 = vlaneseq
        %v1025 = vshrl.u32 %v1024, 7
        %v1026 = vsub.s32 2, %v1025
        %v1027 = vrot.slane %v939, %v1026
        %v1028 = vmul.f32 %v1027, %v933
        %v1029 = vsel %vm853, %v1028, 0.0
        %1030 = vadd.xlane.f32.xlu0 %v1029
        %v1031 = vpop.xlane.xlu0 %1030
        %v1032 = vlaneseq
        %v1033 = vshrl.u32 %v1032, 7
        %v1034 = vsub.s32 2, %v1033
        %v1035 = vrot.slane %v935, %v1034
        %v1036 = vmul.f32 %v1035, %v926
        %v1037 = vmul.f32 %v1036, 1.442695
        %v1038 = vpow.pop %v1037
        %v1039 = vmul.f32 %v1038, %v1007
        %v1040 = vlaneseq
        %v1041 = vshrl.u32 %v1040, 7
        %v1042 = vsub.s32 2, %v1041
        %v1043 = vrot.slane %v937, %v1042
        %v1044 = vmul.f32 %v1023, %v1043
        %v1045 = vadd.f32 %v1039, %v1044
        %v1046 = vmul.f32 %v1045, %v1031
        %v1047 = vsel %vm662, %v1046, 0.0
        %v1048 = vrot.slane %v1047, 4
        %v1049 = vadd.f32 %v1047, %v1048
        %v1050 = vrot.slane %v1049, 2
        %v1051 = vadd.f32 %v1049, %v1050
        %v1052 = vrot.slane %v1051, 1
        %v1053 = vadd.f32 %v1051, %v1052
        %v1054 = vlaneseq
        %v1055 = vshrl.u32 %v1054, 7
        %v1056 = vsub.s32 3, %v1055
        %v1057 = vrot.slane %v938, %v1056
        %v1058 = vmul.f32 %v1057, %v933
        %v1059 = vsel %vm853, %v1058, 0.0
        %1060 = vadd.xlane.f32.xlu0 %v1059
        %v1061 = vpop.xlane.xlu0 %1060
        %v1062 = vlaneseq
        %v1063 = vshrl.u32 %v1062, 7
        %v1064 = vsub.s32 3, %v1063
        %v1065 = vrot.slane %v939, %v1064
        %v1066 = vmul.f32 %v1065, %v933
        %v1067 = vsel %vm853, %v1066, 0.0
        %1068 = vadd.xlane.f32.xlu0 %v1067
        %v1069 = vpop.xlane.xlu0 %1068
        %v1070 = vlaneseq
        %v1071 = vshrl.u32 %v1070, 7
        %v1072 = vsub.s32 3, %v1071
        %v1073 = vrot.slane %v935, %v1072
        %v1074 = vmul.f32 %v1073, %v926
        %v1075 = vmul.f32 %v1074, 1.442695
        %v1076 = vpow.pop %v1075
        %v1077 = vmul.f32 %v1076, %v1045
        %v1078 = vlaneseq
        %v1079 = vshrl.u32 %v1078, 7
        %v1080 = vsub.s32 3, %v1079
        %v1081 = vrot.slane %v937, %v1080
        %v1082 = vmul.f32 %v1061, %v1081
        %v1083 = vadd.f32 %v1077, %v1082
        %v1084 = vmul.f32 %v1083, %v1069
        %v1085 = vsel %vm662, %v1084, 0.0
        %v1086 = vrot.slane %v1085, 4
        %v1087 = vadd.f32 %v1085, %v1086
        %v1088 = vrot.slane %v1087, 2
        %v1089 = vadd.f32 %v1087, %v1088
        %v1090 = vrot.slane %v1089, 1
        %v1091 = vadd.f32 %v1089, %v1090
        %v1092 = vlaneseq
        %v1093 = vshrl.u32 %v1092, 7
        %v1094 = vsub.s32 4, %v1093
        %v1095 = vrot.slane %v938, %v1094
        %v1096 = vmul.f32 %v1095, %v933
        %v1097 = vsel %vm853, %v1096, 0.0
        %1098 = vadd.xlane.f32.xlu0 %v1097
        %v1099 = vpop.xlane.xlu0 %1098
        %v1100 = vlaneseq
        %v1101 = vshrl.u32 %v1100, 7
        %v1102 = vsub.s32 4, %v1101
        %v1103 = vrot.slane %v939, %v1102
        %v1104 = vmul.f32 %v1103, %v933
        %v1105 = vsel %vm853, %v1104, 0.0
        %1106 = vadd.xlane.f32.xlu0 %v1105
        %v1107 = vpop.xlane.xlu0 %1106
        %v1108 = vlaneseq
        %v1109 = vshrl.u32 %v1108, 7
        %v1110 = vsub.s32 4, %v1109
        %v1111 = vrot.slane %v935, %v1110
        %v1112 = vmul.f32 %v1111, %v926
        %v1113 = vmul.f32 %v1112, 1.442695
        %v1114 = vpow.pop %v1113
        %v1115 = vmul.f32 %v1114, %v1083
        %v1116 = vlaneseq
        %v1117 = vshrl.u32 %v1116, 7
        %v1118 = vsub.s32 4, %v1117
        %v1119 = vrot.slane %v937, %v1118
        %v1120 = vmul.f32 %v1099, %v1119
        %v1121 = vadd.f32 %v1115, %v1120
        %v1122 = vmul.f32 %v1121, %v1107
        %v1123 = vsel %vm662, %v1122, 0.0
        %v1124 = vrot.slane %v1123, 4
        %v1125 = vadd.f32 %v1123, %v1124
        %v1126 = vrot.slane %v1125, 2
        %v1127 = vadd.f32 %v1125, %v1126
        %v1128 = vrot.slane %v1127, 1
        %v1129 = vadd.f32 %v1127, %v1128
        %v1130 = vlaneseq
        %v1131 = vshrl.u32 %v1130, 7
        %v1132 = vsub.s32 5, %v1131
        %v1133 = vrot.slane %v938, %v1132
        %v1134 = vmul.f32 %v1133, %v933
        %v1135 = vsel %vm853, %v1134, 0.0
        %1136 = vadd.xlane.f32.xlu0 %v1135
        %v1137 = vpop.xlane.xlu0 %1136
        %v1138 = vlaneseq
        %v1139 = vshrl.u32 %v1138, 7
        %v1140 = vsub.s32 5, %v1139
        %v1141 = vrot.slane %v939, %v1140
        %v1142 = vmul.f32 %v1141, %v933
        %v1143 = vsel %vm853, %v1142, 0.0
        %1144 = vadd.xlane.f32.xlu0 %v1143
        %v1145 = vpop.xlane.xlu0 %1144
        %v1146 = vlaneseq
        %v1147 = vshrl.u32 %v1146, 7
        %v1148 = vsub.s32 5, %v1147
        %v1149 = vrot.slane %v935, %v1148
        %v1150 = vmul.f32 %v1149, %v926
        %v1151 = vmul.f32 %v1150, 1.442695
        %v1152 = vpow.pop %v1151
        %v1153 = vmul.f32 %v1152, %v1121
        %v1154 = vlaneseq
        %v1155 = vshrl.u32 %v1154, 7
        %v1156 = vsub.s32 5, %v1155
        %v1157 = vrot.slane %v937, %v1156
        %v1158 = vmul.f32 %v1137, %v1157
        %v1159 = vadd.f32 %v1153, %v1158
        %v1160 = vmul.f32 %v1159, %v1145
        %v1161 = vsel %vm662, %v1160, 0.0
        %v1162 = vrot.slane %v1161, 4
        %v1163 = vadd.f32 %v1161, %v1162
        %v1164 = vrot.slane %v1163, 2
        %v1165 = vadd.f32 %v1163, %v1164
        %v1166 = vrot.slane %v1165, 1
        %v1167 = vadd.f32 %v1165, %v1166
        %v1168 = vlaneseq
        %v1169 = vshrl.u32 %v1168, 7
        %v1170 = vsub.s32 6, %v1169
        %v1171 = vrot.slane %v938, %v1170
        %v1172 = vmul.f32 %v1171, %v933
        %v1173 = vsel %vm853, %v1172, 0.0
        %1174 = vadd.xlane.f32.xlu0 %v1173
        %v1175 = vpop.xlane.xlu0 %1174
        %v1176 = vlaneseq
        %v1177 = vshrl.u32 %v1176, 7
        %v1178 = vsub.s32 6, %v1177
        %v1179 = vrot.slane %v939, %v1178
        %v1180 = vmul.f32 %v1179, %v933
        %v1181 = vsel %vm853, %v1180, 0.0
        %1182 = vadd.xlane.f32.xlu0 %v1181
        %v1183 = vpop.xlane.xlu0 %1182
        %v1184 = vlaneseq
        %v1185 = vshrl.u32 %v1184, 7
        %v1186 = vsub.s32 6, %v1185
        %v1187 = vrot.slane %v935, %v1186
        %v1188 = vmul.f32 %v1187, %v926
        %v1189 = vmul.f32 %v1188, 1.442695
        %v1190 = vpow.pop %v1189
        %v1191 = vmul.f32 %v1190, %v1159
        %v1192 = vlaneseq
        %v1193 = vshrl.u32 %v1192, 7
        %v1194 = vsub.s32 6, %v1193
        %v1195 = vrot.slane %v937, %v1194
        %v1196 = vmul.f32 %v1175, %v1195
        %v1197 = vadd.f32 %v1191, %v1196
        %v1198 = vmul.f32 %v1197, %v1183
        %v1199 = vsel %vm662, %v1198, 0.0
        %v1200 = vrot.slane %v1199, 4
        %v1201 = vadd.f32 %v1199, %v1200
        %v1202 = vrot.slane %v1201, 2
        %v1203 = vadd.f32 %v1201, %v1202
        %v1204 = vrot.slane %v1203, 1
        %v1205 = vadd.f32 %v1203, %v1204
        %v1206 = vlaneseq
        %v1207 = vshrl.u32 %v1206, 7
        %v1208 = vsub.s32 7, %v1207
        %v1209 = vrot.slane %v938, %v1208
        %v1210 = vmul.f32 %v1209, %v933
        %v1211 = vsel %vm853, %v1210, 0.0
        %1212 = vadd.xlane.f32.xlu0 %v1211
        %v1213 = vpop.xlane.xlu0 %1212
        %v1214 = vlaneseq
        %v1215 = vshrl.u32 %v1214, 7
        %v1216 = vsub.s32 7, %v1215
        %v1217 = vrot.slane %v939, %v1216
        %v1218 = vmul.f32 %v1217, %v933
        %v1219 = vsel %vm853, %v1218, 0.0
        %1220 = vadd.xlane.f32.xlu0 %v1219
        %v1221 = vpop.xlane.xlu0 %1220
        %v1222 = vlaneseq
        %v1223 = vshrl.u32 %v1222, 7
        %v1224 = vsub.s32 7, %v1223
        %v1225 = vrot.slane %v935, %v1224
        %v1226 = vmul.f32 %v1225, %v926
        %v1227 = vmul.f32 %v1226, 1.442695
        %v1228 = vpow.pop %v1227
        %v1229 = vmul.f32 %v1228, %v1197
        %v1230 = vlaneseq
        %v1231 = vshrl.u32 %v1230, 7
        %v1232 = vsub.s32 7, %v1231
        %v1233 = vrot.slane %v937, %v1232
        %v1234 = vmul.f32 %v1213, %v1233
        %v1235 = vadd.f32 %v1229, %v1234
        %v1236 = vmul.f32 %v1235, %v1221
        %v1237 = vsel %vm662, %v1236, 0.0
        %v1238 = vrot.slane %v1237, 4
        %v1239 = vadd.f32 %v1237, %v1238
        %v1240 = vrot.slane %v1239, 2
        %v1241 = vadd.f32 %v1239, %v1240
        %v1242 = vrot.slane %v1241, 1
        %v1243 = vadd.f32 %v1241, %v1242
        %vm1244 = vcmask 1040384
        %v1245 = vsel %vm1244, %v977, %v1015
        %vm1246 = vcmask 1041408
        %v1247 = vsel %vm1246, %v1245, %v1053
        %v1248 = vsel %vm710, %v1247, %v1091
        %v1249 = vsel %vm857, %v1248, %v1129
        %v1250 = vsel %vm756, %v1249, %v1167
        %v1251 = vsel %vm742, %v1250, %v1205
        %v1252 = vsel %vm728, %v1251, %v1243
        %1253 = vst.msk [vmem:[#allocation8] sm:$0xff] %vm662, %v1252
        %1254 = vst.msk [vmem:[#allocation2] sm:$0xff] %vm662, %v1235
        %v1255 = vld [vmem:[#allocation8] sm:$0xff]
        %v1256 = vld [vmem:[#allocation5] sm:$0xff]
        %v1257 = vld [vmem:[#allocation29] sm:$0x1]
        %v1259 = vlaneseq
        %v1260 = vshrl.u32 %v1259, 7
        %v1261 = vsub.s32 0, %v1260
        %v1262 = vrot.slane %v1257, %v1261
        %v1264 = vmul.f32 %v1256, %v1262
        %v1265 = vadd.f32 %v1255, %v1264
        %v1266 = vxor.u32 %v701, 2147483648
        %v1267 = vmul.f32 %v1266, 1.442695
        %v1268 = vpow.pop %v1267
        %v1269 = vadd.f32 %v1268, 1.0
        %v1270 = vrcp.pop %v1269
        %v1271 = vmul.f32 1.0, %v1270
        %v1272 = vmul.f32 %v701, %v1271
        %1274 = vrot.lane.b32.xlu0 %v1272, 96
        %v1275 = vpop.permute.xlu0 %1274
        %v1277 = vmul.f32 %v1265, %v1275
        %v1278 = vpack.c.bf16 %v1277, %v1277
        %v1279 = vld [vmem:[#allocation24] sm:$0xf]
        %v1280 = vld [vmem:[#allocation24 + $0x4] sm:$0xf]
        %v1281 = vld [vmem:[#allocation24 + $0x8] sm:$0xf]
        %v1282 = vld [vmem:[#allocation24 + $0xc] sm:$0xf]
        %v1283 = vld [vmem:[#allocation26] sm:$0x1]
        %v1285 = vlaneseq
        %v1286 = vshrl.u32 %v1285, 7
        %v1287 = vsub.s32 0, %v1286
        %v1288 = vrot.slane %v1283, %v1287
        %v1294 = vunpack.c.l.b16 %v1279
        %v1295 = vunpack.c.l.b16 %v1280
        %v1296 = vunpack.c.l.b16 %v1281
        %v1297 = vunpack.c.l.b16 %v1282
        %v1298 = vpack.c.b16 %v1295, %v1294
        %v1299 = vpack.c.b16 %v1297, %v1296
        %v1303 = vsel %vm662, %v1278, 0
        %1305 = vmatprep.subr.bf16.mxu0 0
        %1306 = vmatpush1.bf16.msra.mxu0 %v1298
        %1307 = vmatprep.subr.bf16.mxu0 0
        %1308 = vmatpush1.bf16.msra.mxu0 %v1299
        %1309 = vmatprep.subr.bf16.mxu0 0
        %1310 = vmatpush1.bf16.msra.mxu0 0
        %1311 = vmatprep.subr.bf16.mxu0 0
        %1312 = vmatpush1.bf16.msra.mxu0 0
        %1313 = vmatprep.subr.bf16.mxu0 0
        %1314 = vmatpush1.bf16.msra.mxu0 0
        %1315 = vmatprep.subr.bf16.mxu0 0
        %1316 = vmatpush1.bf16.msra.mxu0 0
        %1317 = vmatprep.subr.bf16.mxu0 0
        %1318 = vmatpush1.bf16.msra.mxu0 0
        %1319 = vmatprep.subr.bf16.mxu0 0
        %1320 = vmatpush1.bf16.msra.mxu0 0
        %1321 = vmatprep.subr.bf16.mxu0 0
        %1322 = vmatpush1.bf16.msra.mxu0 0
        %1323 = vmatprep.subr.bf16.mxu0 0
        %1324 = vmatpush1.bf16.msra.mxu0 0
        %1325 = vmatprep.subr.bf16.mxu0 0
        %1326 = vmatpush1.bf16.msra.mxu0 0
        %1327 = vmatprep.subr.bf16.mxu0 0
        %1328 = vmatpush1.bf16.msra.mxu0 0
        %1329 = vmatprep.subr.bf16.mxu0 0
        %1330 = vmatpush1.bf16.msra.mxu0 0
        %1331 = vmatprep.subr.bf16.mxu0 0
        %1332 = vmatpush1.bf16.msra.mxu0 0
        %1333 = vmatprep.subr.bf16.mxu0 0
        %1334 = vmatpush1.bf16.msra.mxu0 0
        %1335 = vmatprep.subr.bf16.mxu0 0
        %1336 = vmatpush1.bf16.msra.mxu0 0
        %1337 = vmatprep.mubr.bf16.mxu0 0
        %1338 = vmatmul.mubr.bf16.gmra.mrb[0].mxu0 %v1303
        %v1339 = vpop.f32.mrb[0].mxu0
        %v1340 = vadd.f32 %v1288, %v1339
        %v1341 = vpop.f32.mrb[0].mxu0
        %v1342 = vpop.f32.mrb[0].mxu0
        %v1343 = vpop.f32.mrb[0].mxu0
        %1344 = vdwg.mxu0
        %1345 = vst.msk [vmem:[%s628] sm:$0xff] %vm662, %v1340
        %s1346 = sand.u32 %s338, 1
        %s1347 = scalar_lea.sflag [#allocation11], %s1346
        %s1348 = sand.u32 %s338, 1
        %s1349 = smul.addr %s1348, 8
        %s1350 = scalar_lea.vmem [#allocation30], %s1349
        // Predicated region
        $region129: #{tpu_custom_call.1} parent=71 // pred_check
          %p1351 = pneg %p348
        $region130: #{tpu_custom_call.1} parent=71 // pred_check_branch
          %1353 = sbr.rel (%p1351) target = $region132
        $region131: #{tpu_custom_call.1} parent=71 // pred_region
          %s1355 = ssub.s32 128, 128
          %1356 = vsyncadd %s1347, %s1355
          %s1357 = sadd.s32 %s41, %s40
          %s1358 = smul.addr %s1357, 128
          %s1359 = scalar_lea.hbm %s13, %s1358
          %s1361 = sshll.u32 %s1350, 4
          %s1362 = int_to_ptr.vmem [resolvable:$true] %s1361
          %1364 = dma.vmem_to_hbm [thread:$0]  %s1362, 128, %s1359, %s1347
        $region132: #{tpu_custom_call.1} parent=71 // pred_fallthru
          _
      $region72: #{tpu_custom_call.1} parent=5 // pred_fallthru
        _
      %p1365 = scmp.le.s32.totalorder 2, %s31
      // Predicated region
      $region133: #{tpu_custom_call.1} parent=5 // pred_check
        %p1366 = pneg %p1365
      $region134: #{tpu_custom_call.1} parent=5 // pred_check_branch
        %1368 = sbr.rel (%p1366) target = $region136
      $region135: #{tpu_custom_call.1} parent=5 // pred_region
        %s1369 = ssub.s32 %s31, 2
        // Predicated region
        $region137: #{tpu_custom_call.1} parent=135 // pred_check
          %p1370 = pneg %p354
        $region138: #{tpu_custom_call.1} parent=135 // pred_check_branch
          %1372 = sbr.rel (%p1370) target = $region140
        $region139: #{tpu_custom_call.1} parent=135 // pred_region
          %s1373 = sand.u32 %s339, 1
          %s1374 = scalar_lea.sflag [#allocation11], %s1373
          %s1375 = sand.u32 %s339, 1
          %s1376 = smul.addr %s1375, 8
          %s1377 = scalar_lea.vmem [#allocation30], %s1376
          %1378 = dma.done %s1374, 128
        $region140: #{tpu_custom_call.1} parent=135 // pred_fallthru
          _
      $region136: #{tpu_custom_call.1} parent=5 // pred_fallthru
        _
    $region6: #{tpu_custom_call.1} parent=1 // loop_footer
      %s35 = sadd.s32 1, %s31
    $region7: #{tpu_custom_call.1} parent=1 // loop_footer_branch
      %30 = sbr.rel target = $region3
    $region8: #{tpu_custom_call.1} parent=1 // loop_exit
      _
    %1379 = vsyncpa [#allocation10], 1
    %s1380 = scalar_lea.sflag [#allocation10], 1
    %1381 = vsyncpa %s1380, 1
    %1382 = vsyncpa [#allocation13], 1
    %1383 = vsyncpa [#allocation16], 1
    %1384 = vsyncpa [#allocation19], 1
    %1385 = vsyncpa [#allocation22], 1
    %1386 = vsyncpa [#allocation25], 1
    %1387 = vsyncpa [#allocation28], 1
    %1388 = vsyncpa [#allocation11], 1
    %s1389 = scalar_lea.sflag [#allocation11], 1
    %1390 = vsyncpa %s1389, 1

</llo_original>
